<compile_context>
chip_gen: v7x
topology: tpu7x:2x2x1
jax: 0.10.0
libtpu: 0.0.40
codegen_flags: <defaults>
</compile_context>

<pallas_src>
import functools

import jax
import jax.numpy as jnp
from jax import lax
from jax.experimental import pallas as pl
from jax.experimental.pallas import tpu as pltpu


def _round_up(x, m):
    return ((x + m - 1) // m) * m


# ---------------------------------------------------------------------------
# Stage 1: packed per-type projection  x_target_t = relu(x_t @ W_t^T + b_t)
# ---------------------------------------------------------------------------
def _project_neighbors(x_packed, w_bd, b_bd, *, offsets, counts, embed_dim,
                       tile_p):
    p_pad, width = x_packed.shape
    n_types = len(counts)

    def kernel(xp_ref, w_ref, b_ref, out_ref):
        z = jnp.dot(xp_ref[...], w_ref[...],
                    preferred_element_type=jnp.float32) + b_ref[...]
        z = jnp.maximum(z, 0.0)
        # Zero the lane blocks that do not belong to this row's neighbor type
        # (block-diag packing leaves relu(b_t) in foreign lane blocks).
        row = (pl.program_id(0) * tile_p
               + lax.broadcasted_iota(jnp.int32, z.shape, 0))
        lane = lax.broadcasted_iota(jnp.int32, z.shape, 1)
        mask = None
        for t in range(n_types):
            m_t = ((row >= offsets[t]) & (row < offsets[t] + counts[t])
                   & (lane >= t * embed_dim) & (lane < (t + 1) * embed_dim))
            mask = m_t if mask is None else (mask | m_t)
        out_ref[...] = jnp.where(mask, z, 0.0).astype(out_ref.dtype)

    return pl.pallas_call(
        kernel,
        out_shape=jax.ShapeDtypeStruct((p_pad, width), jnp.bfloat16),
        grid=(p_pad // tile_p,),
        in_specs=[
            pl.BlockSpec((tile_p, width), lambda i: (i, 0)),   # packed x
            pl.BlockSpec((width, width), lambda i: (0, 0)),    # block-diag W^T
            pl.BlockSpec((1, width), lambda i: (0, 0)),        # packed bias
        ],
        out_specs=pl.BlockSpec((tile_p, width), lambda i: (i, 0)),
        compiler_params=pltpu.CompilerParams(
            dimension_semantics=("parallel",)),
    )(x_packed, w_bd, b_bd)


# ---------------------------------------------------------------------------
# Stage 2: tiled aggregation matmul + heterogeneous attention combine
# ---------------------------------------------------------------------------
def _aggregate_and_combine(adj, xt_packed, xn, u1, u2, wl_n, wl_c, bl,
                           *, tile_n, tile_k):
    n_pad, p_pad = adj.shape
    e = xn.shape[1]
    width = xt_packed.shape[1]          # = n_types * e, lane-packed
    n_types = width // e

    def kernel(a_ref, xt_ref, xn_ref, u1_ref, u2_ref,
               wln_ref, wlc_ref, bl_ref, out_ref, acc_ref):
        k = pl.program_id(1)

        @pl.when(k == 0)
        def _():
            acc_ref[...] = jnp.zeros_like(acc_ref)

        # One lane-full MXU matmul accumulates all neighbor-type aggregations
        # (per-type 1/rowsum is already folded into the adjacency rows).
        acc_ref[...] += jnp.dot(a_ref[...], xt_ref[...],
                                preferred_element_type=jnp.float32)

        @pl.when(k == pl.num_programs(1) - 1)
        def _():
            aggr = acc_ref[...]                              # (tile_n, 4E)
            xn_v = xn_ref[...]
            u1_v = u1_ref[...]                               # aggr half of u
            u2_v = u2_ref[...]                               # x_node half of u

            a_list = [aggr[:, t * e:(t + 1) * e] for t in range(n_types)]

            # attention scores: VPU row reductions instead of (E,1) matmuls
            base = jnp.sum(xn_v * u2_v, axis=-1, keepdims=True)
            zs = []
            for a in a_list:
                z = jnp.sum(a * u1_v, axis=-1, keepdims=True) + base
                zs.append(jnp.where(z > 0, z, 0.01 * z))     # leaky_relu
            z_max = zs[0]
            for z in zs[1:]:
                z_max = jnp.maximum(z_max, z)
            es = [jnp.exp(z - z_max) for z in zs]            # stabilized
            denom = es[0]
            for e_ in es[1:]:
                denom = denom + e_
            inv_sum = pl.reciprocal(denom, approx=True)

            combined = es[0] * a_list[0]
            for e_, a in zip(es[1:], a_list[1:]):
                combined = combined + e_ * a
            combined = combined * inv_sum

            # final Linear on cat((x_node, combined)) WITHOUT a lane concat:
            # two K=E matmuls accumulated in f32.
            y = (jnp.dot(xn_v.astype(jnp.bfloat16), wln_ref[...],
                         preferred_element_type=jnp.float32)
                 + jnp.dot(combined.astype(jnp.bfloat16), wlc_ref[...],
                           preferred_element_type=jnp.float32)
                 + bl_ref[...])
            y = jnp.maximum(y, 0.0)

            # F.normalize(p=2, dim=-1): y / max(||y||_2, 1e-12)
            sumsq = jnp.sum(y * y, axis=-1, keepdims=True)
            out_ref[...] = y * lax.rsqrt(jnp.maximum(sumsq, 1e-24))

    grid = (n_pad // tile_n, p_pad // tile_k)
    return pl.pallas_call(
        kernel,
        out_shape=jax.ShapeDtypeStruct((n_pad, e), jnp.float32),
        grid=grid,
        in_specs=[
            pl.BlockSpec((tile_n, tile_k), lambda i, k: (i, k)),  # adjacency
            pl.BlockSpec((tile_k, width), lambda i, k: (k, 0)),   # x_target
            pl.BlockSpec((tile_n, e), lambda i, k: (i, 0)),       # x_node
            pl.BlockSpec((1, e), lambda i, k: (0, 0)),            # u (aggr half)
            pl.BlockSpec((1, e), lambda i, k: (0, 0)),            # u (node half)
            pl.BlockSpec((e, e), lambda i, k: (0, 0)),            # W_lin (node)
            pl.BlockSpec((e, e), lambda i, k: (0, 0)),            # W_lin (comb)
            pl.BlockSpec((1, e), lambda i, k: (0, 0)),            # b_lin
        ],
        out_specs=pl.BlockSpec((tile_n, e), lambda i, k: (i, 0)),
        scratch_shapes=[pltpu.VMEM((tile_n, width), jnp.float32)],
        compiler_params=pltpu.CompilerParams(
            dimension_semantics=("parallel", "arbitrary"),
            # Tile budget sized for v7x's 64 MiB physical VMEM; also well under
            # v5e/v6e's 128 MiB.
            vmem_limit_bytes=48 * 1024 * 1024),
    )(adj, xt_packed, xn, u1, u2, wl_n, wl_c, bl)


# ---------------------------------------------------------------------------
# Glue: packing, dense adjacency (scatter stays in XLA outside the kernels)
# ---------------------------------------------------------------------------
def het_agg_forward(params, x_list, edges_list, x_node, num_node,
                    *, tile_n=128, tile_k=256):
    e = x_node.shape[1]
    n_types = len(x_list)
    ni = [int(x.shape[0]) for x in x_list]
    off = [0]
    for n in ni:
        off.append(off[-1] + n)
    p_total = off[-1]

    p_pad = _round_up(max(p_total, 1), tile_k)
    n_pad = _round_up(max(num_node, 1), tile_n)
    width = n_types * e

    # ---- lane-packed neighbor features / block-diagonal weights (stage 1) ----
    x_packed = jnp.zeros((p_pad, width), jnp.float32)
    w_bd = jnp.zeros((width, width), jnp.float32)
    b_bd = jnp.zeros((1, width), jnp.float32)
    for t in range(n_types):
        x_packed = x_packed.at[off[t]:off[t] + ni[t],
                               t * e:(t + 1) * e].set(x_list[t])
        w_bd = w_bd.at[t * e:(t + 1) * e,
                       t * e:(t + 1) * e].set(params["agg_w"][t].T)
        b_bd = b_bd.at[0, t * e:(t + 1) * e].set(params["agg_b"][t])

    xt_packed = _project_neighbors(
        x_packed.astype(jnp.bfloat16), w_bd.astype(jnp.bfloat16), b_bd,
        offsets=tuple(off), counts=tuple(ni), embed_dim=e, tile_p=tile_k)

    # ---- dense row-stacked adjacency with the per-type mean folded in ----
    # (equivalent to index_add_ / bincount; the scatter runs as XLA glue)
    adj = jnp.zeros((n_pad, p_pad), jnp.float32)
    for t in range(n_types):
        src, tgt = edges_list[t][0], edges_list[t][1]
        a_t = jnp.zeros((n_pad, ni[t]), jnp.float32).at[src, tgt].add(1.0)
        row_sum = jnp.zeros((n_pad,), jnp.float32).at[src].add(1.0)
        a_t = a_t * (1.0 / jnp.clip(row_sum, 1.0, None))[:, None]
        adj = adj.at[:, off[t]:off[t] + ni[t]].set(a_t)
    adj = adj.astype(jnp.bfloat16)

    xn_pad = jnp.zeros((n_pad, e), jnp.float32).at[:num_node].set(x_node)

    u = params["u"].reshape(2 * e)
    u1 = u[:e].reshape(1, e)          # applies to the aggr half of the score cat
    u2 = u[e:].reshape(1, e)          # applies to the x_node half
    wl_t = params["lin_w"].T          # (2E, E); final cat order = (x_node, comb)
    wl_n = wl_t[:e].astype(jnp.bfloat16)
    wl_c = wl_t[e:].astype(jnp.bfloat16)
    bl = params["lin_b"].reshape(1, e)

    out = _aggregate_and_combine(adj, xt_packed, xn_pad, u1, u2, wl_n, wl_c, bl,
                                 tile_n=tile_n, tile_k=tile_k)
    return out[:num_node]


# ---------------------------------------------------------------------------
# Pure-JAX reference (mirrors the PyTorch module, f32)
# ---------------------------------------------------------------------------
def het_agg_reference(params, x_list, edges_list, x_node, num_node):
    e = x_node.shape[1]
    aggs = []
    for t in range(4):
        src, tgt = edges_list[t][0], edges_list[t][1]
        x_target = jax.nn.relu(x_list[t] @ params["agg_w"][t].T
                               + params["agg_b"][t])
        aggr = jnp.zeros((num_node, e), jnp.float32).at[src].add(x_target[tgt])
        row_sum = jnp.clip(
            jnp.zeros((num_node,), jnp.float32).at[src].add(1.0), 1.0, None)
        aggs.append(aggr / row_sum[:, None])
    u = params["u"]
    scores = [jnp.exp(jax.nn.leaky_relu(
        jnp.concatenate([a, x_node], axis=-1) @ u, 0.01)) for a in aggs]
    s_sum = scores[0] + scores[1] + scores[2] + scores[3]
    combined = sum((s / s_sum) * a for s, a in zip(scores, aggs))
    cat = jnp.concatenate([x_node, combined], axis=-1)
    y = jax.nn.relu(cat @ params["lin_w"].T + params["lin_b"])
    norm = jnp.maximum(jnp.linalg.norm(y, axis=-1, keepdims=True), 1e-12)
    return y / norm


# ---------------------------------------------------------------------------
if __name__ == "__main__":
    key = jax.random.PRNGKey(0)

    E = 32                        # embed_dim
    NUM_NODE = 16                 # number of "source" nodes aggregated into
    N_FEATS = [16, 12, 24, 8]     # rows of x_list[i]
    N_EDGES = [40, 32, 48, 24]    # edges per neighbor type

    keys = jax.random.split(key, 32)
    ki = iter(keys)

    x_list = [jax.random.normal(next(ki), (nf, E), jnp.float32)
              for nf in N_FEATS]
    edges_list = []
    for nf, ne in zip(N_FEATS, N_EDGES):
        src = jax.random.randint(next(ki), (ne,), 0, NUM_NODE)
        tgt = jax.random.randint(next(ki), (ne,), 0, nf)
        edges_list.append(jnp.stack([src, tgt], axis=0))
    x_node = jax.random.normal(next(ki), (NUM_NODE, E), jnp.float32)

    params = {
        "agg_w": [jax.random.normal(next(ki), (E, E), jnp.float32) * 0.1
                  for _ in range(4)],
        "agg_b": [jax.random.normal(next(ki), (E,), jnp.float32) * 0.1
                  for _ in range(4)],
        "u": jax.random.normal(next(ki), (2 * E, 1), jnp.float32),
        "lin_w": jax.random.normal(next(ki), (E, 2 * E), jnp.float32) * 0.1,
        "lin_b": jax.random.normal(next(ki), (E,), jnp.float32) * 0.1,
    }

    out = het_agg_forward(params, x_list, edges_list, x_node, NUM_NODE)
    out = jax.block_until_ready(out)
    assert out.shape == (NUM_NODE, E) and out.dtype == jnp.float32
    assert bool(jnp.all(jnp.isfinite(out)))

    ref = het_agg_reference(params, x_list, edges_list, x_node, NUM_NODE)
    max_err = float(jnp.max(jnp.abs(out - ref)))
    assert max_err < 0.1, f"max abs error vs f32 reference: {max_err}"

    print("KERNEL_OK")
</pallas_src>

<mosaic_0001>
module attributes {stable_mosaic.version = 11 : i64} {
  func.func @kernel(%arg0: i32, %arg1: memref<256x128xbf16, #tpu.memory_space<vmem>>, %arg2: memref<128x128xbf16, #tpu.memory_space<vmem>>, %arg3: memref<1x128xf32, #tpu.memory_space<vmem>>, %arg4: memref<256x128xbf16, #tpu.memory_space<vmem>>) attributes {dimension_semantics = [#tpu.dimension_semantics<parallel>], iteration_bounds = array<i64: 1>, scalar_prefetch = 0 : i64, scratch_operands = 0 : i64, tpu.core_type = #tpu.core_type<tc>, window_params = [{transform_indices = @transform_0, window_bounds = array<i64: 256, 128>}, {pipeline_mode = #tpu.pipeline_mode<synchronous>, transform_indices = @transform_1, window_bounds = array<i64: 128, 128>}, {pipeline_mode = #tpu.pipeline_mode<synchronous>, transform_indices = @transform_2, window_bounds = array<i64: 1, 128>}, {transform_indices = @transform_3, window_bounds = array<i64: 256, 128>}]} {
    %c0 = arith.constant 0 : index
    %c0_0 = arith.constant 0 : index
    %0 = vector.load %arg1[%c0, %c0_0] : memref<256x128xbf16, #tpu.memory_space<vmem>>, vector<256x128xbf16>
    %c0_1 = arith.constant 0 : index
    %c0_2 = arith.constant 0 : index
    %1 = vector.load %arg2[%c0_1, %c0_2] : memref<128x128xbf16, #tpu.memory_space<vmem>>, vector<128x128xbf16>
    %cst = arith.constant dense<0.000000e+00> : vector<256x128xf32>
    %2 = tpu.matmul %0, %1, %cst {dimension_numbers = #tpu.dot_dimension_numbers<[1], [0], [0], [1], [0, 0, 1, 1], [], []>} : vector<256x128xbf16>, vector<128x128xbf16>, vector<256x128xf32> -> vector<256x128xf32>
    %c0_3 = arith.constant 0 : index
    %c0_4 = arith.constant 0 : index
    %3 = vector.load %arg3[%c0_3, %c0_4] : memref<1x128xf32, #tpu.memory_space<vmem>>, vector<1x128xf32>
    %4 = vector.broadcast %3 : vector<1x128xf32> to vector<256x128xf32>
    %5 = arith.addf %2, %4 : vector<256x128xf32>
    %cst_5 = arith.constant 0.000000e+00 : f32
    %6 = vector.broadcast %cst_5 : f32 to vector<256x128xf32>
    %7 = arith.maximumf %5, %6 : vector<256x128xf32>
    %c256_i32 = arith.constant 256 : i32
    %8 = arith.muli %arg0, %c256_i32 : i32
    %9 = tpu.iota {dimensions = array<i32: 0>} : vector<256x128xi32>
    %10 = vector.broadcast %8 : i32 to vector<256x128xi32>
    %11 = arith.addi %10, %9 : vector<256x128xi32>
    %12 = tpu.iota {dimensions = array<i32: 1>} : vector<256x128xi32>
    %c0_i32 = arith.constant 0 : i32
    %13 = vector.broadcast %c0_i32 : i32 to vector<256x128xi32>
    %14 = arith.cmpi sge, %11, %13 : vector<256x128xi32>
    %c16_i32 = arith.constant 16 : i32
    %15 = vector.broadcast %c16_i32 : i32 to vector<256x128xi32>
    %16 = arith.cmpi slt, %11, %15 : vector<256x128xi32>
    %17 = arith.andi %14, %16 : vector<256x128xi1>
    %c0_i32_6 = arith.constant 0 : i32
    %18 = vector.broadcast %c0_i32_6 : i32 to vector<256x128xi32>
    %19 = arith.cmpi sge, %12, %18 : vector<256x128xi32>
    %20 = arith.andi %17, %19 : vector<256x128xi1>
    %c32_i32 = arith.constant 32 : i32
    %21 = vector.broadcast %c32_i32 : i32 to vector<256x128xi32>
    %22 = arith.cmpi slt, %12, %21 : vector<256x128xi32>
    %23 = arith.andi %20, %22 : vector<256x128xi1>
    %c16_i32_7 = arith.constant 16 : i32
    %24 = vector.broadcast %c16_i32_7 : i32 to vector<256x128xi32>
    %25 = arith.cmpi sge, %11, %24 : vector<256x128xi32>
    %c28_i32 = arith.constant 28 : i32
    %26 = vector.broadcast %c28_i32 : i32 to vector<256x128xi32>
    %27 = arith.cmpi slt, %11, %26 : vector<256x128xi32>
    %28 = arith.andi %25, %27 : vector<256x128xi1>
    %c32_i32_8 = arith.constant 32 : i32
    %29 = vector.broadcast %c32_i32_8 : i32 to vector<256x128xi32>
    %30 = arith.cmpi sge, %12, %29 : vector<256x128xi32>
    %31 = arith.andi %28, %30 : vector<256x128xi1>
    %c64_i32 = arith.constant 64 : i32
    %32 = vector.broadcast %c64_i32 : i32 to vector<256x128xi32>
    %33 = arith.cmpi slt, %12, %32 : vector<256x128xi32>
    %34 = arith.andi %31, %33 : vector<256x128xi1>
    %35 = arith.ori %23, %34 : vector<256x128xi1>
    %c28_i32_9 = arith.constant 28 : i32
    %36 = vector.broadcast %c28_i32_9 : i32 to vector<256x128xi32>
    %37 = arith.cmpi sge, %11, %36 : vector<256x128xi32>
    %c52_i32 = arith.constant 52 : i32
    %38 = vector.broadcast %c52_i32 : i32 to vector<256x128xi32>
    %39 = arith.cmpi slt, %11, %38 : vector<256x128xi32>
    %40 = arith.andi %37, %39 : vector<256x128xi1>
    %c64_i32_10 = arith.constant 64 : i32
    %41 = vector.broadcast %c64_i32_10 : i32 to vector<256x128xi32>
    %42 = arith.cmpi sge, %12, %41 : vector<256x128xi32>
    %43 = arith.andi %40, %42 : vector<256x128xi1>
    %c96_i32 = arith.constant 96 : i32
    %44 = vector.broadcast %c96_i32 : i32 to vector<256x128xi32>
    %45 = arith.cmpi slt, %12, %44 : vector<256x128xi32>
    %46 = arith.andi %43, %45 : vector<256x128xi1>
    %47 = arith.ori %35, %46 : vector<256x128xi1>
    %c52_i32_11 = arith.constant 52 : i32
    %48 = vector.broadcast %c52_i32_11 : i32 to vector<256x128xi32>
    %49 = arith.cmpi sge, %11, %48 : vector<256x128xi32>
    %c60_i32 = arith.constant 60 : i32
    %50 = vector.broadcast %c60_i32 : i32 to vector<256x128xi32>
    %51 = arith.cmpi slt, %11, %50 : vector<256x128xi32>
    %52 = arith.andi %49, %51 : vector<256x128xi1>
    %c96_i32_12 = arith.constant 96 : i32
    %53 = vector.broadcast %c96_i32_12 : i32 to vector<256x128xi32>
    %54 = arith.cmpi sge, %12, %53 : vector<256x128xi32>
    %55 = arith.andi %52, %54 : vector<256x128xi1>
    %c128_i32 = arith.constant 128 : i32
    %56 = vector.broadcast %c128_i32 : i32 to vector<256x128xi32>
    %57 = arith.cmpi slt, %12, %56 : vector<256x128xi32>
    %58 = arith.andi %55, %57 : vector<256x128xi1>
    %59 = arith.ori %47, %58 : vector<256x128xi1>
    %cst_13 = arith.constant 0.000000e+00 : f32
    %60 = vector.broadcast %cst_13 : f32 to vector<256x128xf32>
    %61 = arith.select %59, %7, %60 : vector<256x128xi1>, vector<256x128xf32>
    %62 = arith.truncf %61 : vector<256x128xf32> to vector<256x128xbf16>
    %c0_14 = arith.constant 0 : index
    %c0_15 = arith.constant 0 : index
    %63 = vector.load %arg4[%c0_14, %c0_15] : memref<256x128xbf16, #tpu.memory_space<vmem>>, vector<256x128xbf16>
    tpu.vector_store %arg4[%c0_14, %c0_15], %62 {strides = array<i32>} : memref<256x128xbf16, #tpu.memory_space<vmem>>, vector<256x128xbf16>,
    return
  }
  func.func @transform_0(%arg0: i32) -> (i32, i32) {
    %c0_i32 = arith.constant 0 : i32
    %c0_i32_0 = arith.constant 0 : i32
    return %arg0, %c0_i32 : i32, i32
  }
  func.func @transform_1(%arg0: i32) -> (i32, i32) {
    %c0_i32 = arith.constant 0 : i32
    %c0_i32_0 = arith.constant 0 : i32
    %c0_i32_1 = arith.constant 0 : i32
    return %c0_i32, %c0_i32_0 : i32, i32
  }
  func.func @transform_2(%arg0: i32) -> (i32, i32) {
    %c0_i32 = arith.constant 0 : i32
    %c0_i32_0 = arith.constant 0 : i32
    %c0_i32_1 = arith.constant 0 : i32
    return %c0_i32, %c0_i32_0 : i32, i32
  }
  func.func @transform_3(%arg0: i32) -> (i32, i32) {
    %c0_i32 = arith.constant 0 : i32
    %c0_i32_0 = arith.constant 0 : i32
    return %arg0, %c0_i32 : i32, i32
  }
}

</mosaic_0001>

<llo_original>
// kernel: tpu_custom_call.1
$region0: #{tpu_custom_call.1}
  #allocation0 [shape = 'u32[]', space=smem, size = 0x4, offset = 0x4, fixed_abs, tag = 'smem constant byte address 0x4 - core index']
  #allocation1 [shape = 'u32[144,128]{1,0:T(1,128)}', space=vmem, size = 0x12000, scoped, tag = 'internal scratch']
  %s0 = inlined_call_operand.hbm [shape: bf16[256,128], index: 0, kind: input, shape index: {}]
  %s1 = inlined_call_operand.hbm [shape: bf16[128,128], index: 1, kind: input, shape index: {}]
  %s2 = inlined_call_operand.vmem [shape: f32[1,128], index: 2, kind: input, shape index: {}]
  %s3 = inlined_call_operand.hbm [shape: bf16[256,128], index: 3, kind: output, shape index: {}]
  %s4 = sld [smem:[#allocation0]]
  $region30: #{tpu_custom_call.1} parent=0
    _
  %s6 = ssub.s32 1, %s4
  %s7 = scalar_select 0, %s6, %s4
  $region1: #{tpu_custom_call.1} parent=0
    #allocation2 [shape = 'u8[65536]{0}', space=vmem, size = 0x10000, scoped, tag = 'input window, operand 0, single buffered']
    #allocation3 [shape = 's32[1]{0}', space=sflag, size = 0x4, scoped, tag = 'scoped memory for tpu_custom_call.1']
    #allocation4 [shape = 's32[1]{0}', space=sflag, size = 0x4, scoped, tag = 'scoped memory for tpu_custom_call.1']
    #allocation5 [shape = 'u8[32768]{0}', space=vmem, size = 0x8000, scoped, tag = 'input window, operand 1, single buffered']
    #allocation6 [shape = 's32[1]{0}', space=sflag, size = 0x4, scoped, tag = 'scoped memory for tpu_custom_call.1']
    #allocation7 [shape = 'u8[65536]{0}', space=vmem, size = 0x10000, scoped, tag = 'output window, operand 0, single buffered']
    %8 = vsyncpa [#allocation3], 0
    %9 = vsyncpa [#allocation6], 0
    %10 = vsyncpa [#allocation4], 0
    // Predicated region
    $region2: #{tpu_custom_call.1} parent=1 // pred_check
      _
    $region3: #{tpu_custom_call.1} parent=1 // pred_check_branch
      %12 = sbr.rel (0) target = $region5
    $region4: #{tpu_custom_call.1} parent=1 // pred_region
      %s14 = ssub.s32 2048, 2048
      %15 = vsyncadd [#allocation3], %s14
      %s16 = sshll.u32 [#allocation2], 4
      %s17 = int_to_ptr.vmem [resolvable:$true] %s16
      %22 = dma.hbm_to_vmem [thread:$0]  %s0, 2048, %s17, [#allocation3], 64, 64, 4
    $region5: #{tpu_custom_call.1} parent=1 // pred_fallthru
      _
    // Predicated region
    $region6: #{tpu_custom_call.1} parent=1 // pred_check
      _
    $region7: #{tpu_custom_call.1} parent=1 // pred_check_branch
      %24 = sbr.rel (0) target = $region9
    $region8: #{tpu_custom_call.1} parent=1 // pred_region
      %s26 = ssub.s32 1024, 1024
      %27 = vsyncadd [#allocation6], %s26
      %s28 = sshll.u32 [#allocation5], 4
      %s29 = int_to_ptr.vmem [resolvable:$true] %s28
      %34 = dma.hbm_to_vmem [thread:$0]  %s1, 1024, %s29, [#allocation6], 64, 64, 4
    $region9: #{tpu_custom_call.1} parent=1 // pred_fallthru
      _
    // Predicated region
    $region10: #{tpu_custom_call.1} parent=1 // pred_check
      _
    $region11: #{tpu_custom_call.1} parent=1 // pred_check_branch
      %36 = sbr.rel (0) target = $region13
    $region12: #{tpu_custom_call.1} parent=1 // pred_region
      _
    $region13: #{tpu_custom_call.1} parent=1 // pred_fallthru
      _
    // Predicated region
    $region14: #{tpu_custom_call.1} parent=1 // pred_check
      _
    $region15: #{tpu_custom_call.1} parent=1 // pred_check_branch
      %38 = sbr.rel (0) target = $region17
    $region16: #{tpu_custom_call.1} parent=1 // pred_region
      %39 = dma.done [#allocation3], 2048
    $region17: #{tpu_custom_call.1} parent=1 // pred_fallthru
      _
    // Predicated region
    $region18: #{tpu_custom_call.1} parent=1 // pred_check
      _
    $region19: #{tpu_custom_call.1} parent=1 // pred_check_branch
      %41 = sbr.rel (0) target = $region21
    $region20: #{tpu_custom_call.1} parent=1 // pred_region
      %42 = dma.done [#allocation6], 1024
    $region21: #{tpu_custom_call.1} parent=1 // pred_fallthru
      _
    %v44 = vld [vmem:[#allocation2] sm:$0xf]
    %v45 = vld [vmem:[#allocation2 + $0x4] sm:$0xf]
    %v46 = vld [vmem:[#allocation2 + $0x8] sm:$0xf]
    %v47 = vld [vmem:[#allocation2 + $0xc] sm:$0xf]
    %v48 = vld [vmem:[#allocation2 + $0x10] sm:$0xf]
    %v49 = vld [vmem:[#allocation2 + $0x14] sm:$0xf]
    %v50 = vld [vmem:[#allocation2 + $0x18] sm:$0xf]
    %v51 = vld [vmem:[#allocation2 + $0x1c] sm:$0xf]
    %v52 = vld [vmem:[#allocation2 + $0x20] sm:$0xf]
    %v53 = vld [vmem:[#allocation2 + $0x24] sm:$0xf]
    %v54 = vld [vmem:[#allocation2 + $0x28] sm:$0xf]
    %v55 = vld [vmem:[#allocation2 + $0x2c] sm:$0xf]
    %v56 = vld [vmem:[#allocation2 + $0x30] sm:$0xf]
    %v57 = vld [vmem:[#allocation2 + $0x34] sm:$0xf]
    %v58 = vld [vmem:[#allocation2 + $0x38] sm:$0xf]
    %v59 = vld [vmem:[#allocation2 + $0x3c] sm:$0xf]
    %v60 = vld [vmem:[#allocation2 + $0x40] sm:$0xf]
    %v61 = vld [vmem:[#allocation2 + $0x44] sm:$0xf]
    %v62 = vld [vmem:[#allocation2 + $0x48] sm:$0xf]
    %v63 = vld [vmem:[#allocation2 + $0x4c] sm:$0xf]
    %v64 = vld [vmem:[#allocation2 + $0x50] sm:$0xf]
    %v65 = vld [vmem:[#allocation2 + $0x54] sm:$0xf]
    %v66 = vld [vmem:[#allocation2 + $0x58] sm:$0xf]
    %v67 = vld [vmem:[#allocation2 + $0x5c] sm:$0xf]
    %v68 = vld [vmem:[#allocation2 + $0x60] sm:$0xf]
    %v69 = vld [vmem:[#allocation2 + $0x64] sm:$0xf]
    %v70 = vld [vmem:[#allocation2 + $0x68] sm:$0xf]
    %v71 = vld [vmem:[#allocation2 + $0x6c] sm:$0xf]
    %v72 = vld [vmem:[#allocation2 + $0x70] sm:$0xf]
    %v73 = vld [vmem:[#allocation2 + $0x74] sm:$0xf]
    %v74 = vld [vmem:[#allocation2 + $0x78] sm:$0xf]
    %v75 = vld [vmem:[#allocation2 + $0x7c] sm:$0xf]
    %v76 = vld [vmem:[#allocation5] sm:$0xf]
    %v77 = vld [vmem:[#allocation5 + $0x4] sm:$0xf]
    %v78 = vld [vmem:[#allocation5 + $0x8] sm:$0xf]
    %v79 = vld [vmem:[#allocation5 + $0xc] sm:$0xf]
    %v80 = vld [vmem:[#allocation5 + $0x10] sm:$0xf]
    %v81 = vld [vmem:[#allocation5 + $0x14] sm:$0xf]
    %v82 = vld [vmem:[#allocation5 + $0x18] sm:$0xf]
    %v83 = vld [vmem:[#allocation5 + $0x1c] sm:$0xf]
    %v84 = vld [vmem:[#allocation5 + $0x20] sm:$0xf]
    %v85 = vld [vmem:[#allocation5 + $0x24] sm:$0xf]
    %v86 = vld [vmem:[#allocation5 + $0x28] sm:$0xf]
    %v87 = vld [vmem:[#allocation5 + $0x2c] sm:$0xf]
    %v88 = vld [vmem:[#allocation5 + $0x30] sm:$0xf]
    %v89 = vld [vmem:[#allocation5 + $0x34] sm:$0xf]
    %v90 = vld [vmem:[#allocation5 + $0x38] sm:$0xf]
    %v91 = vld [vmem:[#allocation5 + $0x3c] sm:$0xf]
    %v92 = vld [vmem:[%s2] sm:$0x1]
    %v94 = vlaneseq
    %v95 = vshrl.u32 %v94, 7
    %v96 = vsub.s32 0, %v95
    %v97 = vrot.slane %v92, %v96
    %v131 = vunpack.c.l.b16 %v44
    %v132 = vunpack.c.l.b16 %v45
    %v133 = vunpack.c.l.b16 %v46
    %v134 = vunpack.c.l.b16 %v47
    %v135 = vunpack.c.l.b16 %v48
    %v136 = vunpack.c.l.b16 %v49
    %v137 = vunpack.c.l.b16 %v50
    %v138 = vunpack.c.l.b16 %v51
    %v139 = vunpack.c.l.b16 %v52
    %v140 = vunpack.c.l.b16 %v53
    %v141 = vunpack.c.l.b16 %v54
    %v142 = vunpack.c.l.b16 %v55
    %v143 = vunpack.c.l.b16 %v56
    %v144 = vunpack.c.l.b16 %v57
    %v145 = vunpack.c.l.b16 %v58
    %v146 = vunpack.c.l.b16 %v59
    %v147 = vunpack.c.l.b16 %v60
    %v148 = vunpack.c.l.b16 %v61
    %v149 = vunpack.c.l.b16 %v62
    %v150 = vunpack.c.l.b16 %v63
    %v151 = vunpack.c.l.b16 %v64
    %v152 = vunpack.c.l.b16 %v65
    %v153 = vunpack.c.l.b16 %v66
    %v154 = vunpack.c.l.b16 %v67
    %v155 = vunpack.c.l.b16 %v68
    %v156 = vunpack.c.l.b16 %v69
    %v157 = vunpack.c.l.b16 %v70
    %v158 = vunpack.c.l.b16 %v71
    %v159 = vunpack.c.l.b16 %v72
    %v160 = vunpack.c.l.b16 %v73
    %v161 = vunpack.c.l.b16 %v74
    %v162 = vunpack.c.l.b16 %v75
    %v163 = vpack.c.b16 %v132, %v131
    %v164 = vpack.c.b16 %v134, %v133
    %v165 = vpack.c.b16 %v136, %v135
    %v166 = vpack.c.b16 %v138, %v137
    %v167 = vpack.c.b16 %v140, %v139
    %v168 = vpack.c.b16 %v142, %v141
    %v169 = vpack.c.b16 %v144, %v143
    %v170 = vpack.c.b16 %v146, %v145
    %v171 = vpack.c.b16 %v148, %v147
    %v172 = vpack.c.b16 %v150, %v149
    %v173 = vpack.c.b16 %v152, %v151
    %v174 = vpack.c.b16 %v154, %v153
    %v175 = vpack.c.b16 %v156, %v155
    %v176 = vpack.c.b16 %v158, %v157
    %v177 = vpack.c.b16 %v160, %v159
    %v178 = vpack.c.b16 %v162, %v161
    %v211 = vunpack.c.l.b16 %v76
    %v212 = vunpack.c.l.b16 %v77
    %v213 = vunpack.c.l.b16 %v78
    %v214 = vunpack.c.l.b16 %v79
    %v215 = vunpack.c.l.b16 %v80
    %v216 = vunpack.c.l.b16 %v81
    %v217 = vunpack.c.l.b16 %v82
    %v218 = vunpack.c.l.b16 %v83
    %v219 = vunpack.c.l.b16 %v84
    %v220 = vunpack.c.l.b16 %v85
    %v221 = vunpack.c.l.b16 %v86
    %v222 = vunpack.c.l.b16 %v87
    %v223 = vunpack.c.l.b16 %v88
    %v224 = vunpack.c.l.b16 %v89
    %v225 = vunpack.c.l.b16 %v90
    %v226 = vunpack.c.l.b16 %v91
    %v227 = vpack.c.b16 %v212, %v211
    %v228 = vpack.c.b16 %v214, %v213
    %v229 = vpack.c.b16 %v216, %v215
    %v230 = vpack.c.b16 %v218, %v217
    %v231 = vpack.c.b16 %v220, %v219
    %v232 = vpack.c.b16 %v222, %v221
    %v233 = vpack.c.b16 %v224, %v223
    %v234 = vpack.c.b16 %v226, %v225
    %243 = vmatprep.subr.bf16.mxu0 0
    %244 = vmatpush1.bf16.msra.mxu0 %v227
    %245 = vmatprep.subr.bf16.mxu0 0
    %246 = vmatpush1.bf16.msra.mxu0 %v228
    %247 = vmatprep.subr.bf16.mxu0 0
    %248 = vmatpush1.bf16.msra.mxu0 %v229
    %249 = vmatprep.subr.bf16.mxu0 0
    %250 = vmatpush1.bf16.msra.mxu0 %v230
    %251 = vmatprep.subr.bf16.mxu0 0
    %252 = vmatpush1.bf16.msra.mxu0 %v231
    %253 = vmatprep.subr.bf16.mxu0 0
    %254 = vmatpush1.bf16.msra.mxu0 %v232
    %255 = vmatprep.subr.bf16.mxu0 0
    %256 = vmatpush1.bf16.msra.mxu0 %v233
    %257 = vmatprep.subr.bf16.mxu0 0
    %258 = vmatpush1.bf16.msra.mxu0 %v234
    %259 = vmatprep.subr.bf16.mxu0 0
    %260 = vmatpush1.bf16.msra.mxu0 0
    %261 = vmatprep.subr.bf16.mxu0 0
    %262 = vmatpush1.bf16.msra.mxu0 0
    %263 = vmatprep.subr.bf16.mxu0 0
    %264 = vmatpush1.bf16.msra.mxu0 0
    %265 = vmatprep.subr.bf16.mxu0 0
    %266 = vmatpush1.bf16.msra.mxu0 0
    %267 = vmatprep.subr.bf16.mxu0 0
    %268 = vmatpush1.bf16.msra.mxu0 0
    %269 = vmatprep.subr.bf16.mxu0 0
    %270 = vmatpush1.bf16.msra.mxu0 0
    %271 = vmatprep.subr.bf16.mxu0 0
    %272 = vmatpush1.bf16.msra.mxu0 0
    %273 = vmatprep.subr.bf16.mxu0 0
    %274 = vmatpush1.bf16.msra.mxu0 0
    %275 = vmatprep.mubr.bf16.mxu0 0
    %276 = vmatmul.mubr.bf16.gmra.mrb[0].mxu0 %v163
    %v277 = vpop.f32.mrb[0].mxu0
    %v278 = vadd.f32 %v97, %v277
    %v279 = vpop.f32.mrb[0].mxu0
    %v280 = vpop.f32.mrb[0].mxu0
    %v281 = vadd.f32 %v97, %v280
    %v282 = vpop.f32.mrb[0].mxu0
    %283 = vmatprep.mubr.bf16.mxu0 0
    %284 = vmatmul.mubr.bf16.gmra.mrb[0].mxu0 %v164
    %v285 = vpop.f32.mrb[0].mxu0
    %v286 = vadd.f32 %v97, %v285
    %v287 = vpop.f32.mrb[0].mxu0
    %v288 = vpop.f32.mrb[0].mxu0
    %v289 = vadd.f32 %v97, %v288
    %v290 = vpop.f32.mrb[0].mxu0
    %291 = vmatprep.mubr.bf16.mxu0 0
    %292 = vmatmul.mubr.bf16.gmra.mrb[0].mxu0 %v165
    %v293 = vpop.f32.mrb[0].mxu0
    %v294 = vadd.f32 %v97, %v293
    %v295 = vpop.f32.mrb[0].mxu0
    %v296 = vpop.f32.mrb[0].mxu0
    %v297 = vadd.f32 %v97, %v296
    %v298 = vpop.f32.mrb[0].mxu0
    %299 = vmatprep.mubr.bf16.mxu0 0
    %300 = vmatmul.mubr.bf16.gmra.mrb[0].mxu0 %v166
    %v301 = vpop.f32.mrb[0].mxu0
    %v302 = vadd.f32 %v97, %v301
    %v303 = vpop.f32.mrb[0].mxu0
    %v304 = vpop.f32.mrb[0].mxu0
    %v305 = vadd.f32 %v97, %v304
    %v306 = vpop.f32.mrb[0].mxu0
    %307 = vmatprep.mubr.bf16.mxu0 0
    %308 = vmatmul.mubr.bf16.gmra.mrb[0].mxu0 %v167
    %v309 = vpop.f32.mrb[0].mxu0
    %v310 = vadd.f32 %v97, %v309
    %v311 = vpop.f32.mrb[0].mxu0
    %v312 = vpop.f32.mrb[0].mxu0
    %v313 = vadd.f32 %v97, %v312
    %v314 = vpop.f32.mrb[0].mxu0
    %315 = vmatprep.mubr.bf16.mxu0 0
    %316 = vmatmul.mubr.bf16.gmra.mrb[0].mxu0 %v168
    %v317 = vpop.f32.mrb[0].mxu0
    %v318 = vadd.f32 %v97, %v317
    %v319 = vpop.f32.mrb[0].mxu0
    %v320 = vpop.f32.mrb[0].mxu0
    %v321 = vadd.f32 %v97, %v320
    %v322 = vpop.f32.mrb[0].mxu0
    %323 = vmatprep.mubr.bf16.mxu0 0
    %324 = vmatmul.mubr.bf16.gmra.mrb[0].mxu0 %v169
    %v325 = vpop.f32.mrb[0].mxu0
    %v326 = vadd.f32 %v97, %v325
    %v327 = vpop.f32.mrb[0].mxu0
    %v328 = vpop.f32.mrb[0].mxu0
    %v329 = vadd.f32 %v97, %v328
    %v330 = vpop.f32.mrb[0].mxu0
    %331 = vmatprep.mubr.bf16.mxu0 0
    %332 = vmatmul.mubr.bf16.gmra.mrb[0].mxu0 %v170
    %v333 = vpop.f32.mrb[0].mxu0
    %v334 = vadd.f32 %v97, %v333
    %v335 = vpop.f32.mrb[0].mxu0
    %v336 = vpop.f32.mrb[0].mxu0
    %v337 = vadd.f32 %v97, %v336
    %v338 = vpop.f32.mrb[0].mxu0
    %339 = vmatprep.mubr.bf16.mxu0 0
    %340 = vmatmul.mubr.bf16.gmra.mrb[0].mxu0 %v171
    %v341 = vpop.f32.mrb[0].mxu0
    %v342 = vadd.f32 %v97, %v341
    %v343 = vpop.f32.mrb[0].mxu0
    %v344 = vpop.f32.mrb[0].mxu0
    %v345 = vadd.f32 %v97, %v344
    %v346 = vpop.f32.mrb[0].mxu0
    %347 = vmatprep.mubr.bf16.mxu0 0
    %348 = vmatmul.mubr.bf16.gmra.mrb[0].mxu0 %v172
    %v349 = vpop.f32.mrb[0].mxu0
    %v350 = vadd.f32 %v97, %v349
    %v351 = vpop.f32.mrb[0].mxu0
    %v352 = vpop.f32.mrb[0].mxu0
    %v353 = vadd.f32 %v97, %v352
    %v354 = vpop.f32.mrb[0].mxu0
    %355 = vmatprep.mubr.bf16.mxu0 0
    %356 = vmatmul.mubr.bf16.gmra.mrb[0].mxu0 %v173
    %v357 = vpop.f32.mrb[0].mxu0
    %v358 = vadd.f32 %v97, %v357
    %v359 = vpop.f32.mrb[0].mxu0
    %v360 = vpop.f32.mrb[0].mxu0
    %v361 = vadd.f32 %v97, %v360
    %v362 = vpop.f32.mrb[0].mxu0
    %363 = vmatprep.mubr.bf16.mxu0 0
    %364 = vmatmul.mubr.bf16.gmra.mrb[0].mxu0 %v174
    %v365 = vpop.f32.mrb[0].mxu0
    %v366 = vadd.f32 %v97, %v365
    %v367 = vpop.f32.mrb[0].mxu0
    %v368 = vpop.f32.mrb[0].mxu0
    %v369 = vadd.f32 %v97, %v368
    %v370 = vpop.f32.mrb[0].mxu0
    %371 = vmatprep.mubr.bf16.mxu0 0
    %372 = vmatmul.mubr.bf16.gmra.mrb[0].mxu0 %v175
    %v373 = vpop.f32.mrb[0].mxu0
    %v374 = vadd.f32 %v97, %v373
    %v375 = vpop.f32.mrb[0].mxu0
    %v376 = vpop.f32.mrb[0].mxu0
    %v377 = vadd.f32 %v97, %v376
    %v378 = vpop.f32.mrb[0].mxu0
    %379 = vmatprep.mubr.bf16.mxu0 0
    %380 = vmatmul.mubr.bf16.gmra.mrb[0].mxu0 %v176
    %v381 = vpop.f32.mrb[0].mxu0
    %v382 = vadd.f32 %v97, %v381
    %v383 = vpop.f32.mrb[0].mxu0
    %v384 = vpop.f32.mrb[0].mxu0
    %v385 = vadd.f32 %v97, %v384
    %v386 = vpop.f32.mrb[0].mxu0
    %387 = vmatprep.mubr.bf16.mxu0 0
    %388 = vmatmul.mubr.bf16.gmra.mrb[0].mxu0 %v177
    %v389 = vpop.f32.mrb[0].mxu0
    %v390 = vadd.f32 %v97, %v389
    %v391 = vpop.f32.mrb[0].mxu0
    %v392 = vpop.f32.mrb[0].mxu0
    %v393 = vadd.f32 %v97, %v392
    %v394 = vpop.f32.mrb[0].mxu0
    %395 = vmatprep.mubr.bf16.mxu0 0
    %396 = vmatmul.mubr.bf16.gmra.mrb[0].mxu0 %v178
    %v397 = vpop.f32.mrb[0].mxu0
    %v398 = vadd.f32 %v97, %v397
    %v399 = vpop.f32.mrb[0].mxu0
    %v400 = vpop.f32.mrb[0].mxu0
    %v401 = vadd.f32 %v97, %v400
    %v402 = vpop.f32.mrb[0].mxu0
    %403 = vdwg.mxu0
    %v404 = vmax.f32 %v278, 0.0
    %v405 = vmax.f32 %v281, 0.0
    %v406 = vmax.f32 %v286, 0.0
    %v407 = vmax.f32 %v289, 0.0
    %v408 = vmax.f32 %v294, 0.0
    %v409 = vmax.f32 %v297, 0.0
    %v410 = vmax.f32 %v302, 0.0
    %v411 = vmax.f32 %v305, 0.0
    %v412 = vmax.f32 %v310, 0.0
    %v413 = vmax.f32 %v313, 0.0
    %v414 = vmax.f32 %v318, 0.0
    %v415 = vmax.f32 %v321, 0.0
    %v416 = vmax.f32 %v326, 0.0
    %v417 = vmax.f32 %v329, 0.0
    %v418 = vmax.f32 %v334, 0.0
    %v419 = vmax.f32 %v337, 0.0
    %v420 = vmax.f32 %v342, 0.0
    %v421 = vmax.f32 %v345, 0.0
    %v422 = vmax.f32 %v350, 0.0
    %v423 = vmax.f32 %v353, 0.0
    %v424 = vmax.f32 %v358, 0.0
    %v425 = vmax.f32 %v361, 0.0
    %v426 = vmax.f32 %v366, 0.0
    %v427 = vmax.f32 %v369, 0.0
    %v428 = vmax.f32 %v374, 0.0
    %v429 = vmax.f32 %v377, 0.0
    %v430 = vmax.f32 %v382, 0.0
    %v431 = vmax.f32 %v385, 0.0
    %v432 = vmax.f32 %v390, 0.0
    %v433 = vmax.f32 %v393, 0.0
    %v434 = vmax.f32 %v398, 0.0
    %v435 = vmax.f32 %v401, 0.0
    %s436 = smul.u32 0, 256
    %v437 = vlaneseq
    %v438 = vshrl.u32 %v437, 7
    %v439 = vadd.s32 %v438, 8
    %v440 = vadd.s32 %v438, 16
    %v441 = vadd.s32 %v438, 24
    %v442 = vadd.s32 %v438, 32
    %v443 = vadd.s32 %v438, 40
    %v444 = vadd.s32 %v438, 48
    %v445 = vadd.s32 %v438, 56
    %v446 = vadd.s32 %v438, 64
    %v447 = vadd.s32 %v438, 72
    %v448 = vadd.s32 %v438, 80
    %v449 = vadd.s32 %v438, 88
    %v450 = vadd.s32 %v438, 96
    %v451 = vadd.s32 %v438, 104
    %v452 = vadd.s32 %v438, 112
    %v453 = vadd.s32 %v438, 120
    %v454 = vadd.s32 %v438, 128
    %v455 = vadd.s32 %v438, 136
    %v456 = vadd.s32 %v438, 144
    %v457 = vadd.s32 %v438, 152
    %v458 = vadd.s32 %v438, 160
    %v459 = vadd.s32 %v438, 168
    %v460 = vadd.s32 %v438, 176
    %v461 = vadd.s32 %v438, 184
    %v462 = vadd.s32 %v438, 192
    %v463 = vadd.s32 %v438, 200
    %v464 = vadd.s32 %v438, 208
    %v465 = vadd.s32 %v438, 216
    %v466 = vadd.s32 %v438, 224
    %v467 = vadd.s32 %v438, 232
    %v468 = vadd.s32 %v438, 240
    %v469 = vadd.s32 %v438, 248
    %v470 = vstv %s436
    %v471 = vadd.s32 %v470, %v438
    %v472 = vadd.s32 %v470, %v439
    %v473 = vadd.s32 %v470, %v440
    %v474 = vadd.s32 %v470, %v441
    %v475 = vadd.s32 %v470, %v442
    %v476 = vadd.s32 %v470, %v443
    %v477 = vadd.s32 %v470, %v444
    %v478 = vadd.s32 %v470, %v445
    %v479 = vadd.s32 %v470, %v446
    %v480 = vadd.s32 %v470, %v447
    %v481 = vadd.s32 %v470, %v448
    %v482 = vadd.s32 %v470, %v449
    %v483 = vadd.s32 %v470, %v450
    %v484 = vadd.s32 %v470, %v451
    %v485 = vadd.s32 %v470, %v452
    %v486 = vadd.s32 %v470, %v453
    %v487 = vadd.s32 %v470, %v454
    %v488 = vadd.s32 %v470, %v455
    %v489 = vadd.s32 %v470, %v456
    %v490 = vadd.s32 %v470, %v457
    %v491 = vadd.s32 %v470, %v458
    %v492 = vadd.s32 %v470, %v459
    %v493 = vadd.s32 %v470, %v460
    %v494 = vadd.s32 %v470, %v461
    %v495 = vadd.s32 %v470, %v462
    %v496 = vadd.s32 %v470, %v463
    %v497 = vadd.s32 %v470, %v464
    %v498 = vadd.s32 %v470, %v465
    %v499 = vadd.s32 %v470, %v466
    %v500 = vadd.s32 %v470, %v467
    %v501 = vadd.s32 %v470, %v468
    %v502 = vadd.s32 %v470, %v469
    %v503 = vlaneseq
    %v504 = vand.u32 %v503, 127
    %vm505 = vcmp.ge.s32.totalorder %v471, 0
    %vm506 = vcmp.ge.s32.totalorder %v472, 0
    %vm507 = vcmp.ge.s32.totalorder %v473, 0
    %vm508 = vcmp.ge.s32.totalorder %v474, 0
    %vm509 = vcmp.ge.s32.totalorder %v475, 0
    %vm510 = vcmp.ge.s32.totalorder %v476, 0
    %vm511 = vcmp.ge.s32.totalorder %v477, 0
    %vm512 = vcmp.ge.s32.totalorder %v478, 0
    %vm513 = vcmp.ge.s32.totalorder %v479, 0
    %vm514 = vcmp.ge.s32.totalorder %v480, 0
    %vm515 = vcmp.ge.s32.totalorder %v481, 0
    %vm516 = vcmp.ge.s32.totalorder %v482, 0
    %vm517 = vcmp.ge.s32.totalorder %v483, 0
    %vm518 = vcmp.ge.s32.totalorder %v484, 0
    %vm519 = vcmp.ge.s32.totalorder %v485, 0
    %vm520 = vcmp.ge.s32.totalorder %v486, 0
    %vm521 = vcmp.ge.s32.totalorder %v487, 0
    %vm522 = vcmp.ge.s32.totalorder %v488, 0
    %vm523 = vcmp.ge.s32.totalorder %v489, 0
    %vm524 = vcmp.ge.s32.totalorder %v490, 0
    %vm525 = vcmp.ge.s32.totalorder %v491, 0
    %vm526 = vcmp.ge.s32.totalorder %v492, 0
    %vm527 = vcmp.ge.s32.totalorder %v493, 0
    %vm528 = vcmp.ge.s32.totalorder %v494, 0
    %vm529 = vcmp.ge.s32.totalorder %v495, 0
    %vm530 = vcmp.ge.s32.totalorder %v496, 0
    %vm531 = vcmp.ge.s32.totalorder %v497, 0
    %vm532 = vcmp.ge.s32.totalorder %v498, 0
    %vm533 = vcmp.ge.s32.totalorder %v499, 0
    %vm534 = vcmp.ge.s32.totalorder %v500, 0
    %vm535 = vcmp.ge.s32.totalorder %v501, 0
    %vm536 = vcmp.ge.s32.totalorder %v502, 0
    %vm537 = vcmp.lt.s32.totalorder %v471, 16
    %vm538 = vcmp.lt.s32.totalorder %v472, 16
    %vm539 = vcmp.lt.s32.totalorder %v473, 16
    %vm540 = vcmp.lt.s32.totalorder %v474, 16
    %vm541 = vcmp.lt.s32.totalorder %v475, 16
    %vm542 = vcmp.lt.s32.totalorder %v476, 16
    %vm543 = vcmp.lt.s32.totalorder %v477, 16
    %vm544 = vcmp.lt.s32.totalorder %v478, 16
    %vm545 = vcmp.lt.s32.totalorder %v479, 16
    %vm546 = vcmp.lt.s32.totalorder %v480, 16
    %vm547 = vcmp.lt.s32.totalorder %v481, 16
    %vm548 = vcmp.lt.s32.totalorder %v482, 16
    %vm549 = vcmp.lt.s32.totalorder %v483, 16
    %vm550 = vcmp.lt.s32.totalorder %v484, 16
    %vm551 = vcmp.lt.s32.totalorder %v485, 16
    %vm552 = vcmp.lt.s32.totalorder %v486, 16
    %vm553 = vcmp.lt.s32.totalorder %v487, 16
    %vm554 = vcmp.lt.s32.totalorder %v488, 16
    %vm555 = vcmp.lt.s32.totalorder %v489, 16
    %vm556 = vcmp.lt.s32.totalorder %v490, 16
    %vm557 = vcmp.lt.s32.totalorder %v491, 16
    %vm558 = vcmp.lt.s32.totalorder %v492, 16
    %vm559 = vcmp.lt.s32.totalorder %v493, 16
    %vm560 = vcmp.lt.s32.totalorder %v494, 16
    %vm561 = vcmp.lt.s32.totalorder %v495, 16
    %vm562 = vcmp.lt.s32.totalorder %v496, 16
    %vm563 = vcmp.lt.s32.totalorder %v497, 16
    %vm564 = vcmp.lt.s32.totalorder %v498, 16
    %vm565 = vcmp.lt.s32.totalorder %v499, 16
    %vm566 = vcmp.lt.s32.totalorder %v500, 16
    %vm567 = vcmp.lt.s32.totalorder %v501, 16
    %vm568 = vcmp.lt.s32.totalorder %v502, 16
    %vm569 = vmand %vm505, %vm537
    %vm570 = vmand %vm506, %vm538
    %vm571 = vmand %vm507, %vm539
    %vm572 = vmand %vm508, %vm540
    %vm573 = vmand %vm509, %vm541
    %vm574 = vmand %vm510, %vm542
    %vm575 = vmand %vm511, %vm543
    %vm576 = vmand %vm512, %vm544
    %vm577 = vmand %vm513, %vm545
    %vm578 = vmand %vm514, %vm546
    %vm579 = vmand %vm515, %vm547
    %vm580 = vmand %vm516, %vm548
    %vm581 = vmand %vm517, %vm549
    %vm582 = vmand %vm518, %vm550
    %vm583 = vmand %vm519, %vm551
    %vm584 = vmand %vm520, %vm552
    %vm585 = vmand %vm521, %vm553
    %vm586 = vmand %vm522, %vm554
    %vm587 = vmand %vm523, %vm555
    %vm588 = vmand %vm524, %vm556
    %vm589 = vmand %vm525, %vm557
    %vm590 = vmand %vm526, %vm558
    %vm591 = vmand %vm527, %vm559
    %vm592 = vmand %vm528, %vm560
    %vm593 = vmand %vm529, %vm561
    %vm594 = vmand %vm530, %vm562
    %vm595 = vmand %vm531, %vm563
    %vm596 = vmand %vm532, %vm564
    %vm597 = vmand %vm533, %vm565
    %vm598 = vmand %vm534, %vm566
    %vm599 = vmand %vm535, %vm567
    %vm600 = vmand %vm536, %vm568
    %vm601 = vcmp.ge.s32.totalorder %v504, 0
    %vm602 = vmand %vm569, %vm601
    %vm603 = vmand %vm570, %vm601
    %vm604 = vmand %vm571, %vm601
    %vm605 = vmand %vm572, %vm601
    %vm606 = vmand %vm573, %vm601
    %vm607 = vmand %vm574, %vm601
    %vm608 = vmand %vm575, %vm601
    %vm609 = vmand %vm576, %vm601
    %vm610 = vmand %vm577, %vm601
    %vm611 = vmand %vm578, %vm601
    %vm612 = vmand %vm579, %vm601
    %vm613 = vmand %vm580, %vm601
    %vm614 = vmand %vm581, %vm601
    %vm615 = vmand %vm582, %vm601
    %vm616 = vmand %vm583, %vm601
    %vm617 = vmand %vm584, %vm601
    %vm618 = vmand %vm585, %vm601
    %vm619 = vmand %vm586, %vm601
    %vm620 = vmand %vm587, %vm601
    %vm621 = vmand %vm588, %vm601
    %vm622 = vmand %vm589, %vm601
    %vm623 = vmand %vm590, %vm601
    %vm624 = vmand %vm591, %vm601
    %vm625 = vmand %vm592, %vm601
    %vm626 = vmand %vm593, %vm601
    %vm627 = vmand %vm594, %vm601
    %vm628 = vmand %vm595, %vm601
    %vm629 = vmand %vm596, %vm601
    %vm630 = vmand %vm597, %vm601
    %vm631 = vmand %vm598, %vm601
    %vm632 = vmand %vm599, %vm601
    %vm633 = vmand %vm600, %vm601
    %vm634 = vcmp.lt.s32.totalorder %v504, 32
    %vm635 = vmand %vm602, %vm634
    %vm636 = vmand %vm603, %vm634
    %vm637 = vmand %vm604, %vm634
    %vm638 = vmand %vm605, %vm634
    %vm639 = vmand %vm606, %vm634
    %vm640 = vmand %vm607, %vm634
    %vm641 = vmand %vm608, %vm634
    %vm642 = vmand %vm609, %vm634
    %vm643 = vmand %vm610, %vm634
    %vm644 = vmand %vm611, %vm634
    %vm645 = vmand %vm612, %vm634
    %vm646 = vmand %vm613, %vm634
    %vm647 = vmand %vm614, %vm634
    %vm648 = vmand %vm615, %vm634
    %vm649 = vmand %vm616, %vm634
    %vm650 = vmand %vm617, %vm634
    %vm651 = vmand %vm618, %vm634
    %vm652 = vmand %vm619, %vm634
    %vm653 = vmand %vm620, %vm634
    %vm654 = vmand %vm621, %vm634
    %vm655 = vmand %vm622, %vm634
    %vm656 = vmand %vm623, %vm634
    %vm657 = vmand %vm624, %vm634
    %vm658 = vmand %vm625, %vm634
    %vm659 = vmand %vm626, %vm634
    %vm660 = vmand %vm627, %vm634
    %vm661 = vmand %vm628, %vm634
    %vm662 = vmand %vm629, %vm634
    %vm663 = vmand %vm630, %vm634
    %vm664 = vmand %vm631, %vm634
    %vm665 = vmand %vm632, %vm634
    %vm666 = vmand %vm633, %vm634
    %vm667 = vcmp.ge.s32.totalorder %v471, 16
    %vm668 = vcmp.ge.s32.totalorder %v472, 16
    %vm669 = vcmp.ge.s32.totalorder %v473, 16
    %vm670 = vcmp.ge.s32.totalorder %v474, 16
    %vm671 = vcmp.ge.s32.totalorder %v475, 16
    %vm672 = vcmp.ge.s32.totalorder %v476, 16
    %vm673 = vcmp.ge.s32.totalorder %v477, 16
    %vm674 = vcmp.ge.s32.totalorder %v478, 16
    %vm675 = vcmp.ge.s32.totalorder %v479, 16
    %vm676 = vcmp.ge.s32.totalorder %v480, 16
    %vm677 = vcmp.ge.s32.totalorder %v481, 16
    %vm678 = vcmp.ge.s32.totalorder %v482, 16
    %vm679 = vcmp.ge.s32.totalorder %v483, 16
    %vm680 = vcmp.ge.s32.totalorder %v484, 16
    %vm681 = vcmp.ge.s32.totalorder %v485, 16
    %vm682 = vcmp.ge.s32.totalorder %v486, 16
    %vm683 = vcmp.ge.s32.totalorder %v487, 16
    %vm684 = vcmp.ge.s32.totalorder %v488, 16
    %vm685 = vcmp.ge.s32.totalorder %v489, 16
    %vm686 = vcmp.ge.s32.totalorder %v490, 16
    %vm687 = vcmp.ge.s32.totalorder %v491, 16
    %vm688 = vcmp.ge.s32.totalorder %v492, 16
    %vm689 = vcmp.ge.s32.totalorder %v493, 16
    %vm690 = vcmp.ge.s32.totalorder %v494, 16
    %vm691 = vcmp.ge.s32.totalorder %v495, 16
    %vm692 = vcmp.ge.s32.totalorder %v496, 16
    %vm693 = vcmp.ge.s32.totalorder %v497, 16
    %vm694 = vcmp.ge.s32.totalorder %v498, 16
    %vm695 = vcmp.ge.s32.totalorder %v499, 16
    %vm696 = vcmp.ge.s32.totalorder %v500, 16
    %vm697 = vcmp.ge.s32.totalorder %v501, 16
    %vm698 = vcmp.ge.s32.totalorder %v502, 16
    %vm699 = vcmp.lt.s32.totalorder %v471, 28
    %vm700 = vcmp.lt.s32.totalorder %v472, 28
    %vm701 = vcmp.lt.s32.totalorder %v473, 28
    %vm702 = vcmp.lt.s32.totalorder %v474, 28
    %vm703 = vcmp.lt.s32.totalorder %v475, 28
    %vm704 = vcmp.lt.s32.totalorder %v476, 28
    %vm705 = vcmp.lt.s32.totalorder %v477, 28
    %vm706 = vcmp.lt.s32.totalorder %v478, 28
    %vm707 = vcmp.lt.s32.totalorder %v479, 28
    %vm708 = vcmp.lt.s32.totalorder %v480, 28
    %vm709 = vcmp.lt.s32.totalorder %v481, 28
    %vm710 = vcmp.lt.s32.totalorder %v482, 28
    %vm711 = vcmp.lt.s32.totalorder %v483, 28
    %vm712 = vcmp.lt.s32.totalorder %v484, 28
    %vm713 = vcmp.lt.s32.totalorder %v485, 28
    %vm714 = vcmp.lt.s32.totalorder %v486, 28
    %vm715 = vcmp.lt.s32.totalorder %v487, 28
    %vm716 = vcmp.lt.s32.totalorder %v488, 28
    %vm717 = vcmp.lt.s32.totalorder %v489, 28
    %vm718 = vcmp.lt.s32.totalorder %v490, 28
    %vm719 = vcmp.lt.s32.totalorder %v491, 28
    %vm720 = vcmp.lt.s32.totalorder %v492, 28
    %vm721 = vcmp.lt.s32.totalorder %v493, 28
    %vm722 = vcmp.lt.s32.totalorder %v494, 28
    %vm723 = vcmp.lt.s32.totalorder %v495, 28
    %vm724 = vcmp.lt.s32.totalorder %v496, 28
    %vm725 = vcmp.lt.s32.totalorder %v497, 28
    %vm726 = vcmp.lt.s32.totalorder %v498, 28
    %vm727 = vcmp.lt.s32.totalorder %v499, 28
    %vm728 = vcmp.lt.s32.totalorder %v500, 28
    %vm729 = vcmp.lt.s32.totalorder %v501, 28
    %vm730 = vcmp.lt.s32.totalorder %v502, 28
    %vm731 = vmand %vm667, %vm699
    %vm732 = vmand %vm668, %vm700
    %vm733 = vmand %vm669, %vm701
    %vm734 = vmand %vm670, %vm702
    %vm735 = vmand %vm671, %vm703
    %vm736 = vmand %vm672, %vm704
    %vm737 = vmand %vm673, %vm705
    %vm738 = vmand %vm674, %vm706
    %vm739 = vmand %vm675, %vm707
    %vm740 = vmand %vm676, %vm708
    %vm741 = vmand %vm677, %vm709
    %vm742 = vmand %vm678, %vm710
    %vm743 = vmand %vm679, %vm711
    %vm744 = vmand %vm680, %vm712
    %vm745 = vmand %vm681, %vm713
    %vm746 = vmand %vm682, %vm714
    %vm747 = vmand %vm683, %vm715
    %vm748 = vmand %vm684, %vm716
    %vm749 = vmand %vm685, %vm717
    %vm750 = vmand %vm686, %vm718
    %vm751 = vmand %vm687, %vm719
    %vm752 = vmand %vm688, %vm720
    %vm753 = vmand %vm689, %vm721
    %vm754 = vmand %vm690, %vm722
    %vm755 = vmand %vm691, %vm723
    %vm756 = vmand %vm692, %vm724
    %vm757 = vmand %vm693, %vm725
    %vm758 = vmand %vm694, %vm726
    %vm759 = vmand %vm695, %vm727
    %vm760 = vmand %vm696, %vm728
    %vm761 = vmand %vm697, %vm729
    %vm762 = vmand %vm698, %vm730
    %vm763 = vcmp.ge.s32.totalorder %v504, 32
    %vm764 = vmand %vm731, %vm763
    %vm765 = vmand %vm732, %vm763
    %vm766 = vmand %vm733, %vm763
    %vm767 = vmand %vm734, %vm763
    %vm768 = vmand %vm735, %vm763
    %vm769 = vmand %vm736, %vm763
    %vm770 = vmand %vm737, %vm763
    %vm771 = vmand %vm738, %vm763
    %vm772 = vmand %vm739, %vm763
    %vm773 = vmand %vm740, %vm763
    %vm774 = vmand %vm741, %vm763
    %vm775 = vmand %vm742, %vm763
    %vm776 = vmand %vm743, %vm763
    %vm777 = vmand %vm744, %vm763
    %vm778 = vmand %vm745, %vm763
    %vm779 = vmand %vm746, %vm763
    %vm780 = vmand %vm747, %vm763
    %vm781 = vmand %vm748, %vm763
    %vm782 = vmand %vm749, %vm763
    %vm783 = vmand %vm750, %vm763
    %vm784 = vmand %vm751, %vm763
    %vm785 = vmand %vm752, %vm763
    %vm786 = vmand %vm753, %vm763
    %vm787 = vmand %vm754, %vm763
    %vm788 = vmand %vm755, %vm763
    %vm789 = vmand %vm756, %vm763
    %vm790 = vmand %vm757, %vm763
    %vm791 = vmand %vm758, %vm763
    %vm792 = vmand %vm759, %vm763
    %vm793 = vmand %vm760, %vm763
    %vm794 = vmand %vm761, %vm763
    %vm795 = vmand %vm762, %vm763
    %vm796 = vcmp.lt.s32.totalorder %v504, 64
    %vm797 = vmand %vm764, %vm796
    %vm798 = vmand %vm765, %vm796
    %vm799 = vmand %vm766, %vm796
    %vm800 = vmand %vm767, %vm796
    %vm801 = vmand %vm768, %vm796
    %vm802 = vmand %vm769, %vm796
    %vm803 = vmand %vm770, %vm796
    %vm804 = vmand %vm771, %vm796
    %vm805 = vmand %vm772, %vm796
    %vm806 = vmand %vm773, %vm796
    %vm807 = vmand %vm774, %vm796
    %vm808 = vmand %vm775, %vm796
    %vm809 = vmand %vm776, %vm796
    %vm810 = vmand %vm777, %vm796
    %vm811 = vmand %vm778, %vm796
    %vm812 = vmand %vm779, %vm796
    %vm813 = vmand %vm780, %vm796
    %vm814 = vmand %vm781, %vm796
    %vm815 = vmand %vm782, %vm796
    %vm816 = vmand %vm783, %vm796
    %vm817 = vmand %vm784, %vm796
    %vm818 = vmand %vm785, %vm796
    %vm819 = vmand %vm786, %vm796
    %vm820 = vmand %vm787, %vm796
    %vm821 = vmand %vm788, %vm796
    %vm822 = vmand %vm789, %vm796
    %vm823 = vmand %vm790, %vm796
    %vm824 = vmand %vm791, %vm796
    %vm825 = vmand %vm792, %vm796
    %vm826 = vmand %vm793, %vm796
    %vm827 = vmand %vm794, %vm796
    %vm828 = vmand %vm795, %vm796
    %vm829 = vmor %vm635, %vm797
    %vm830 = vmor %vm636, %vm798
    %vm831 = vmor %vm637, %vm799
    %vm832 = vmor %vm638, %vm800
    %vm833 = vmor %vm639, %vm801
    %vm834 = vmor %vm640, %vm802
    %vm835 = vmor %vm641, %vm803
    %vm836 = vmor %vm642, %vm804
    %vm837 = vmor %vm643, %vm805
    %vm838 = vmor %vm644, %vm806
    %vm839 = vmor %vm645, %vm807
    %vm840 = vmor %vm646, %vm808
    %vm841 = vmor %vm647, %vm809
    %vm842 = vmor %vm648, %vm810
    %vm843 = vmor %vm649, %vm811
    %vm844 = vmor %vm650, %vm812
    %vm845 = vmor %vm651, %vm813
    %vm846 = vmor %vm652, %vm814
    %vm847 = vmor %vm653, %vm815
    %vm848 = vmor %vm654, %vm816
    %vm849 = vmor %vm655, %vm817
    %vm850 = vmor %vm656, %vm818
    %vm851 = vmor %vm657, %vm819
    %vm852 = vmor %vm658, %vm820
    %vm853 = vmor %vm659, %vm821
    %vm854 = vmor %vm660, %vm822
    %vm855 = vmor %vm661, %vm823
    %vm856 = vmor %vm662, %vm824
    %vm857 = vmor %vm663, %vm825
    %vm858 = vmor %vm664, %vm826
    %vm859 = vmor %vm665, %vm827
    %vm860 = vmor %vm666, %vm828
    %vm861 = vcmp.ge.s32.totalorder %v471, 28
    %vm862 = vcmp.ge.s32.totalorder %v472, 28
    %vm863 = vcmp.ge.s32.totalorder %v473, 28
    %vm864 = vcmp.ge.s32.totalorder %v474, 28
    %vm865 = vcmp.ge.s32.totalorder %v475, 28
    %vm866 = vcmp.ge.s32.totalorder %v476, 28
    %vm867 = vcmp.ge.s32.totalorder %v477, 28
    %vm868 = vcmp.ge.s32.totalorder %v478, 28
    %vm869 = vcmp.ge.s32.totalorder %v479, 28
    %vm870 = vcmp.ge.s32.totalorder %v480, 28
    %vm871 = vcmp.ge.s32.totalorder %v481, 28
    %vm872 = vcmp.ge.s32.totalorder %v482, 28
    %vm873 = vcmp.ge.s32.totalorder %v483, 28
    %vm874 = vcmp.ge.s32.totalorder %v484, 28
    %vm875 = vcmp.ge.s32.totalorder %v485, 28
    %vm876 = vcmp.ge.s32.totalorder %v486, 28
    %vm877 = vcmp.ge.s32.totalorder %v487, 28
    %vm878 = vcmp.ge.s32.totalorder %v488, 28
    %vm879 = vcmp.ge.s32.totalorder %v489, 28
    %vm880 = vcmp.ge.s32.totalorder %v490, 28
    %vm881 = vcmp.ge.s32.totalorder %v491, 28
    %vm882 = vcmp.ge.s32.totalorder %v492, 28
    %vm883 = vcmp.ge.s32.totalorder %v493, 28
    %vm884 = vcmp.ge.s32.totalorder %v494, 28
    %vm885 = vcmp.ge.s32.totalorder %v495, 28
    %vm886 = vcmp.ge.s32.totalorder %v496, 28
    %vm887 = vcmp.ge.s32.totalorder %v497, 28
    %vm888 = vcmp.ge.s32.totalorder %v498, 28
    %vm889 = vcmp.ge.s32.totalorder %v499, 28
    %vm890 = vcmp.ge.s32.totalorder %v500, 28
    %vm891 = vcmp.ge.s32.totalorder %v501, 28
    %vm892 = vcmp.ge.s32.totalorder %v502, 28
    %vm893 = vcmp.lt.s32.totalorder %v471, 52
    %vm894 = vcmp.lt.s32.totalorder %v472, 52
    %vm895 = vcmp.lt.s32.totalorder %v473, 52
    %vm896 = vcmp.lt.s32.totalorder %v474, 52
    %vm897 = vcmp.lt.s32.totalorder %v475, 52
    %vm898 = vcmp.lt.s32.totalorder %v476, 52
    %vm899 = vcmp.lt.s32.totalorder %v477, 52
    %vm900 = vcmp.lt.s32.totalorder %v478, 52
    %vm901 = vcmp.lt.s32.totalorder %v479, 52
    %vm902 = vcmp.lt.s32.totalorder %v480, 52
    %vm903 = vcmp.lt.s32.totalorder %v481, 52
    %vm904 = vcmp.lt.s32.totalorder %v482, 52
    %vm905 = vcmp.lt.s32.totalorder %v483, 52
    %vm906 = vcmp.lt.s32.totalorder %v484, 52
    %vm907 = vcmp.lt.s32.totalorder %v485, 52
    %vm908 = vcmp.lt.s32.totalorder %v486, 52
    %vm909 = vcmp.lt.s32.totalorder %v487, 52
    %vm910 = vcmp.lt.s32.totalorder %v488, 52
    %vm911 = vcmp.lt.s32.totalorder %v489, 52
    %vm912 = vcmp.lt.s32.totalorder %v490, 52
    %vm913 = vcmp.lt.s32.totalorder %v491, 52
    %vm914 = vcmp.lt.s32.totalorder %v492, 52
    %vm915 = vcmp.lt.s32.totalorder %v493, 52
    %vm916 = vcmp.lt.s32.totalorder %v494, 52
    %vm917 = vcmp.lt.s32.totalorder %v495, 52
    %vm918 = vcmp.lt.s32.totalorder %v496, 52
    %vm919 = vcmp.lt.s32.totalorder %v497, 52
    %vm920 = vcmp.lt.s32.totalorder %v498, 52
    %vm921 = vcmp.lt.s32.totalorder %v499, 52
    %vm922 = vcmp.lt.s32.totalorder %v500, 52
    %vm923 = vcmp.lt.s32.totalorder %v501, 52
    %vm924 = vcmp.lt.s32.totalorder %v502, 52
    %vm925 = vmand %vm861, %vm893
    %vm926 = vmand %vm862, %vm894
    %vm927 = vmand %vm863, %vm895
    %vm928 = vmand %vm864, %vm896
    %vm929 = vmand %vm865, %vm897
    %vm930 = vmand %vm866, %vm898
    %vm931 = vmand %vm867, %vm899
    %vm932 = vmand %vm868, %vm900
    %vm933 = vmand %vm869, %vm901
    %vm934 = vmand %vm870, %vm902
    %vm935 = vmand %vm871, %vm903
    %vm936 = vmand %vm872, %vm904
    %vm937 = vmand %vm873, %vm905
    %vm938 = vmand %vm874, %vm906
    %vm939 = vmand %vm875, %vm907
    %vm940 = vmand %vm876, %vm908
    %vm941 = vmand %vm877, %vm909
    %vm942 = vmand %vm878, %vm910
    %vm943 = vmand %vm879, %vm911
    %vm944 = vmand %vm880, %vm912
    %vm945 = vmand %vm881, %vm913
    %vm946 = vmand %vm882, %vm914
    %vm947 = vmand %vm883, %vm915
    %vm948 = vmand %vm884, %vm916
    %vm949 = vmand %vm885, %vm917
    %vm950 = vmand %vm886, %vm918
    %vm951 = vmand %vm887, %vm919
    %vm952 = vmand %vm888, %vm920
    %vm953 = vmand %vm889, %vm921
    %vm954 = vmand %vm890, %vm922
    %vm955 = vmand %vm891, %vm923
    %vm956 = vmand %vm892, %vm924
    %vm957 = vcmp.ge.s32.totalorder %v504, 64
    %vm958 = vmand %vm925, %vm957
    %vm959 = vmand %vm926, %vm957
    %vm960 = vmand %vm927, %vm957
    %vm961 = vmand %vm928, %vm957
    %vm962 = vmand %vm929, %vm957
    %vm963 = vmand %vm930, %vm957
    %vm964 = vmand %vm931, %vm957
    %vm965 = vmand %vm932, %vm957
    %vm966 = vmand %vm933, %vm957
    %vm967 = vmand %vm934, %vm957
    %vm968 = vmand %vm935, %vm957
    %vm969 = vmand %vm936, %vm957
    %vm970 = vmand %vm937, %vm957
    %vm971 = vmand %vm938, %vm957
    %vm972 = vmand %vm939, %vm957
    %vm973 = vmand %vm940, %vm957
    %vm974 = vmand %vm941, %vm957
    %vm975 = vmand %vm942, %vm957
    %vm976 = vmand %vm943, %vm957
    %vm977 = vmand %vm944, %vm957
    %vm978 = vmand %vm945, %vm957
    %vm979 = vmand %vm946, %vm957
    %vm980 = vmand %vm947, %vm957
    %vm981 = vmand %vm948, %vm957
    %vm982 = vmand %vm949, %vm957
    %vm983 = vmand %vm950, %vm957
    %vm984 = vmand %vm951, %vm957
    %vm985 = vmand %vm952, %vm957
    %vm986 = vmand %vm953, %vm957
    %vm987 = vmand %vm954, %vm957
    %vm988 = vmand %vm955, %vm957
    %vm989 = vmand %vm956, %vm957
    %vm990 = vcmp.lt.s32.totalorder %v504, 96
    %vm991 = vmand %vm958, %vm990
    %vm992 = vmand %vm959, %vm990
    %vm993 = vmand %vm960, %vm990
    %vm994 = vmand %vm961, %vm990
    %vm995 = vmand %vm962, %vm990
    %vm996 = vmand %vm963, %vm990
    %vm997 = vmand %vm964, %vm990
    %vm998 = vmand %vm965, %vm990
    %vm999 = vmand %vm966, %vm990
    %vm1000 = vmand %vm967, %vm990
    %vm1001 = vmand %vm968, %vm990
    %vm1002 = vmand %vm969, %vm990
    %vm1003 = vmand %vm970, %vm990
    %vm1004 = vmand %vm971, %vm990
    %vm1005 = vmand %vm972, %vm990
    %vm1006 = vmand %vm973, %vm990
    %vm1007 = vmand %vm974, %vm990
    %vm1008 = vmand %vm975, %vm990
    %vm1009 = vmand %vm976, %vm990
    %vm1010 = vmand %vm977, %vm990
    %vm1011 = vmand %vm978, %vm990
    %vm1012 = vmand %vm979, %vm990
    %vm1013 = vmand %vm980, %vm990
    %vm1014 = vmand %vm981, %vm990
    %vm1015 = vmand %vm982, %vm990
    %vm1016 = vmand %vm983, %vm990
    %vm1017 = vmand %vm984, %vm990
    %vm1018 = vmand %vm985, %vm990
    %vm1019 = vmand %vm986, %vm990
    %vm1020 = vmand %vm987, %vm990
    %vm1021 = vmand %vm988, %vm990
    %vm1022 = vmand %vm989, %vm990
    %vm1023 = vmor %vm829, %vm991
    %vm1024 = vmor %vm830, %vm992
    %vm1025 = vmor %vm831, %vm993
    %vm1026 = vmor %vm832, %vm994
    %vm1027 = vmor %vm833, %vm995
    %vm1028 = vmor %vm834, %vm996
    %vm1029 = vmor %vm835, %vm997
    %vm1030 = vmor %vm836, %vm998
    %vm1031 = vmor %vm837, %vm999
    %vm1032 = vmor %vm838, %vm1000
    %vm1033 = vmor %vm839, %vm1001
    %vm1034 = vmor %vm840, %vm1002
    %vm1035 = vmor %vm841, %vm1003
    %vm1036 = vmor %vm842, %vm1004
    %vm1037 = vmor %vm843, %vm1005
    %vm1038 = vmor %vm844, %vm1006
    %vm1039 = vmor %vm845, %vm1007
    %vm1040 = vmor %vm846, %vm1008
    %vm1041 = vmor %vm847, %vm1009
    %vm1042 = vmor %vm848, %vm1010
    %vm1043 = vmor %vm849, %vm1011
    %vm1044 = vmor %vm850, %vm1012
    %vm1045 = vmor %vm851, %vm1013
    %vm1046 = vmor %vm852, %vm1014
    %vm1047 = vmor %vm853, %vm1015
    %vm1048 = vmor %vm854, %vm1016
    %vm1049 = vmor %vm855, %vm1017
    %vm1050 = vmor %vm856, %vm1018
    %vm1051 = vmor %vm857, %vm1019
    %vm1052 = vmor %vm858, %vm1020
    %vm1053 = vmor %vm859, %vm1021
    %vm1054 = vmor %vm860, %vm1022
    %vm1055 = vcmp.ge.s32.totalorder %v471, 52
    %vm1056 = vcmp.ge.s32.totalorder %v472, 52
    %vm1057 = vcmp.ge.s32.totalorder %v473, 52
    %vm1058 = vcmp.ge.s32.totalorder %v474, 52
    %vm1059 = vcmp.ge.s32.totalorder %v475, 52
    %vm1060 = vcmp.ge.s32.totalorder %v476, 52
    %vm1061 = vcmp.ge.s32.totalorder %v477, 52
    %vm1062 = vcmp.ge.s32.totalorder %v478, 52
    %vm1063 = vcmp.ge.s32.totalorder %v479, 52
    %vm1064 = vcmp.ge.s32.totalorder %v480, 52
    %vm1065 = vcmp.ge.s32.totalorder %v481, 52
    %vm1066 = vcmp.ge.s32.totalorder %v482, 52
    %vm1067 = vcmp.ge.s32.totalorder %v483, 52
    %vm1068 = vcmp.ge.s32.totalorder %v484, 52
    %vm1069 = vcmp.ge.s32.totalorder %v485, 52
    %vm1070 = vcmp.ge.s32.totalorder %v486, 52
    %vm1071 = vcmp.ge.s32.totalorder %v487, 52
    %vm1072 = vcmp.ge.s32.totalorder %v488, 52
    %vm1073 = vcmp.ge.s32.totalorder %v489, 52
    %vm1074 = vcmp.ge.s32.totalorder %v490, 52
    %vm1075 = vcmp.ge.s32.totalorder %v491, 52
    %vm1076 = vcmp.ge.s32.totalorder %v492, 52
    %vm1077 = vcmp.ge.s32.totalorder %v493, 52
    %vm1078 = vcmp.ge.s32.totalorder %v494, 52
    %vm1079 = vcmp.ge.s32.totalorder %v495, 52
    %vm1080 = vcmp.ge.s32.totalorder %v496, 52
    %vm1081 = vcmp.ge.s32.totalorder %v497, 52
    %vm1082 = vcmp.ge.s32.totalorder %v498, 52
    %vm1083 = vcmp.ge.s32.totalorder %v499, 52
    %vm1084 = vcmp.ge.s32.totalorder %v500, 52
    %vm1085 = vcmp.ge.s32.totalorder %v501, 52
    %vm1086 = vcmp.ge.s32.totalorder %v502, 52
    %vm1087 = vcmp.lt.s32.totalorder %v471, 60
    %vm1088 = vcmp.lt.s32.totalorder %v472, 60
    %vm1089 = vcmp.lt.s32.totalorder %v473, 60
    %vm1090 = vcmp.lt.s32.totalorder %v474, 60
    %vm1091 = vcmp.lt.s32.totalorder %v475, 60
    %vm1092 = vcmp.lt.s32.totalorder %v476, 60
    %vm1093 = vcmp.lt.s32.totalorder %v477, 60
    %vm1094 = vcmp.lt.s32.totalorder %v478, 60
    %vm1095 = vcmp.lt.s32.totalorder %v479, 60
    %vm1096 = vcmp.lt.s32.totalorder %v480, 60
    %vm1097 = vcmp.lt.s32.totalorder %v481, 60
    %vm1098 = vcmp.lt.s32.totalorder %v482, 60
    %vm1099 = vcmp.lt.s32.totalorder %v483, 60
    %vm1100 = vcmp.lt.s32.totalorder %v484, 60
    %vm1101 = vcmp.lt.s32.totalorder %v485, 60
    %vm1102 = vcmp.lt.s32.totalorder %v486, 60
    %vm1103 = vcmp.lt.s32.totalorder %v487, 60
    %vm1104 = vcmp.lt.s32.totalorder %v488, 60
    %vm1105 = vcmp.lt.s32.totalorder %v489, 60
    %vm1106 = vcmp.lt.s32.totalorder %v490, 60
    %vm1107 = vcmp.lt.s32.totalorder %v491, 60
    %vm1108 = vcmp.lt.s32.totalorder %v492, 60
    %vm1109 = vcmp.lt.s32.totalorder %v493, 60
    %vm1110 = vcmp.lt.s32.totalorder %v494, 60
    %vm1111 = vcmp.lt.s32.totalorder %v495, 60
    %vm1112 = vcmp.lt.s32.totalorder %v496, 60
    %vm1113 = vcmp.lt.s32.totalorder %v497, 60
    %vm1114 = vcmp.lt.s32.totalorder %v498, 60
    %vm1115 = vcmp.lt.s32.totalorder %v499, 60
    %vm1116 = vcmp.lt.s32.totalorder %v500, 60
    %vm1117 = vcmp.lt.s32.totalorder %v501, 60
    %vm1118 = vcmp.lt.s32.totalorder %v502, 60
    %vm1119 = vmand %vm1055, %vm1087
    %vm1120 = vmand %vm1056, %vm1088
    %vm1121 = vmand %vm1057, %vm1089
    %vm1122 = vmand %vm1058, %vm1090
    %vm1123 = vmand %vm1059, %vm1091
    %vm1124 = vmand %vm1060, %vm1092
    %vm1125 = vmand %vm1061, %vm1093
    %vm1126 = vmand %vm1062, %vm1094
    %vm1127 = vmand %vm1063, %vm1095
    %vm1128 = vmand %vm1064, %vm1096
    %vm1129 = vmand %vm1065, %vm1097
    %vm1130 = vmand %vm1066, %vm1098
    %vm1131 = vmand %vm1067, %vm1099
    %vm1132 = vmand %vm1068, %vm1100
    %vm1133 = vmand %vm1069, %vm1101
    %vm1134 = vmand %vm1070, %vm1102
    %vm1135 = vmand %vm1071, %vm1103
    %vm1136 = vmand %vm1072, %vm1104
    %vm1137 = vmand %vm1073, %vm1105
    %vm1138 = vmand %vm1074, %vm1106
    %vm1139 = vmand %vm1075, %vm1107
    %vm1140 = vmand %vm1076, %vm1108
    %vm1141 = vmand %vm1077, %vm1109
    %vm1142 = vmand %vm1078, %vm1110
    %vm1143 = vmand %vm1079, %vm1111
    %vm1144 = vmand %vm1080, %vm1112
    %vm1145 = vmand %vm1081, %vm1113
    %vm1146 = vmand %vm1082, %vm1114
    %vm1147 = vmand %vm1083, %vm1115
    %vm1148 = vmand %vm1084, %vm1116
    %vm1149 = vmand %vm1085, %vm1117
    %vm1150 = vmand %vm1086, %vm1118
    %vm1151 = vcmp.ge.s32.totalorder %v504, 96
    %vm1152 = vmand %vm1119, %vm1151
    %vm1153 = vmand %vm1120, %vm1151
    %vm1154 = vmand %vm1121, %vm1151
    %vm1155 = vmand %vm1122, %vm1151
    %vm1156 = vmand %vm1123, %vm1151
    %vm1157 = vmand %vm1124, %vm1151
    %vm1158 = vmand %vm1125, %vm1151
    %vm1159 = vmand %vm1126, %vm1151
    %vm1160 = vmand %vm1127, %vm1151
    %vm1161 = vmand %vm1128, %vm1151
    %vm1162 = vmand %vm1129, %vm1151
    %vm1163 = vmand %vm1130, %vm1151
    %vm1164 = vmand %vm1131, %vm1151
    %vm1165 = vmand %vm1132, %vm1151
    %vm1166 = vmand %vm1133, %vm1151
    %vm1167 = vmand %vm1134, %vm1151
    %vm1168 = vmand %vm1135, %vm1151
    %vm1169 = vmand %vm1136, %vm1151
    %vm1170 = vmand %vm1137, %vm1151
    %vm1171 = vmand %vm1138, %vm1151
    %vm1172 = vmand %vm1139, %vm1151
    %vm1173 = vmand %vm1140, %vm1151
    %vm1174 = vmand %vm1141, %vm1151
    %vm1175 = vmand %vm1142, %vm1151
    %vm1176 = vmand %vm1143, %vm1151
    %vm1177 = vmand %vm1144, %vm1151
    %vm1178 = vmand %vm1145, %vm1151
    %vm1179 = vmand %vm1146, %vm1151
    %vm1180 = vmand %vm1147, %vm1151
    %vm1181 = vmand %vm1148, %vm1151
    %vm1182 = vmand %vm1149, %vm1151
    %vm1183 = vmand %vm1150, %vm1151
    %vm1184 = vcmp.lt.s32.totalorder %v504, 128
    %vm1185 = vmand %vm1152, %vm1184
    %vm1186 = vmand %vm1153, %vm1184
    %vm1187 = vmand %vm1154, %vm1184
    %vm1188 = vmand %vm1155, %vm1184
    %vm1189 = vmand %vm1156, %vm1184
    %vm1190 = vmand %vm1157, %vm1184
    %vm1191 = vmand %vm1158, %vm1184
    %vm1192 = vmand %vm1159, %vm1184
    %vm1193 = vmand %vm1160, %vm1184
    %vm1194 = vmand %vm1161, %vm1184
    %vm1195 = vmand %vm1162, %vm1184
    %vm1196 = vmand %vm1163, %vm1184
    %vm1197 = vmand %vm1164, %vm1184
    %vm1198 = vmand %vm1165, %vm1184
    %vm1199 = vmand %vm1166, %vm1184
    %vm1200 = vmand %vm1167, %vm1184
    %vm1201 = vmand %vm1168, %vm1184
    %vm1202 = vmand %vm1169, %vm1184
    %vm1203 = vmand %vm1170, %vm1184
    %vm1204 = vmand %vm1171, %vm1184
    %vm1205 = vmand %vm1172, %vm1184
    %vm1206 = vmand %vm1173, %vm1184
    %vm1207 = vmand %vm1174, %vm1184
    %vm1208 = vmand %vm1175, %vm1184
    %vm1209 = vmand %vm1176, %vm1184
    %vm1210 = vmand %vm1177, %vm1184
    %vm1211 = vmand %vm1178, %vm1184
    %vm1212 = vmand %vm1179, %vm1184
    %vm1213 = vmand %vm1180, %vm1184
    %vm1214 = vmand %vm1181, %vm1184
    %vm1215 = vmand %vm1182, %vm1184
    %vm1216 = vmand %vm1183, %vm1184
    %vm1217 = vmor %vm1023, %vm1185
    %vm1218 = vmor %vm1024, %vm1186
    %vm1219 = vmor %vm1025, %vm1187
    %vm1220 = vmor %vm1026, %vm1188
    %vm1221 = vmor %vm1027, %vm1189
    %vm1222 = vmor %vm1028, %vm1190
    %vm1223 = vmor %vm1029, %vm1191
    %vm1224 = vmor %vm1030, %vm1192
    %vm1225 = vmor %vm1031, %vm1193
    %vm1226 = vmor %vm1032, %vm1194
    %vm1227 = vmor %vm1033, %vm1195
    %vm1228 = vmor %vm1034, %vm1196
    %vm1229 = vmor %vm1035, %vm1197
    %vm1230 = vmor %vm1036, %vm1198
    %vm1231 = vmor %vm1037, %vm1199
    %vm1232 = vmor %vm1038, %vm1200
    %vm1233 = vmor %vm1039, %vm1201
    %vm1234 = vmor %vm1040, %vm1202
    %vm1235 = vmor %vm1041, %vm1203
    %vm1236 = vmor %vm1042, %vm1204
    %vm1237 = vmor %vm1043, %vm1205
    %vm1238 = vmor %vm1044, %vm1206
    %vm1239 = vmor %vm1045, %vm1207
    %vm1240 = vmor %vm1046, %vm1208
    %vm1241 = vmor %vm1047, %vm1209
    %vm1242 = vmor %vm1048, %vm1210
    %vm1243 = vmor %vm1049, %vm1211
    %vm1244 = vmor %vm1050, %vm1212
    %vm1245 = vmor %vm1051, %vm1213
    %vm1246 = vmor %vm1052, %vm1214
    %vm1247 = vmor %vm1053, %vm1215
    %vm1248 = vmor %vm1054, %vm1216
    %v1249 = vsel %vm1217, %v404, 0.0
    %v1250 = vsel %vm1218, %v405, 0.0
    %v1251 = vsel %vm1219, %v406, 0.0
    %v1252 = vsel %vm1220, %v407, 0.0
    %v1253 = vsel %vm1221, %v408, 0.0
    %v1254 = vsel %vm1222, %v409, 0.0
    %v1255 = vsel %vm1223, %v410, 0.0
    %v1256 = vsel %vm1224, %v411, 0.0
    %v1257 = vsel %vm1225, %v412, 0.0
    %v1258 = vsel %vm1226, %v413, 0.0
    %v1259 = vsel %vm1227, %v414, 0.0
    %v1260 = vsel %vm1228, %v415, 0.0
    %v1261 = vsel %vm1229, %v416, 0.0
    %v1262 = vsel %vm1230, %v417, 0.0
    %v1263 = vsel %vm1231, %v418, 0.0
    %v1264 = vsel %vm1232, %v419, 0.0
    %v1265 = vsel %vm1233, %v420, 0.0
    %v1266 = vsel %vm1234, %v421, 0.0
    %v1267 = vsel %vm1235, %v422, 0.0
    %v1268 = vsel %vm1236, %v423, 0.0
    %v1269 = vsel %vm1237, %v424, 0.0
    %v1270 = vsel %vm1238, %v425, 0.0
    %v1271 = vsel %vm1239, %v426, 0.0
    %v1272 = vsel %vm1240, %v427, 0.0
    %v1273 = vsel %vm1241, %v428, 0.0
    %v1274 = vsel %vm1242, %v429, 0.0
    %v1275 = vsel %vm1243, %v430, 0.0
    %v1276 = vsel %vm1244, %v431, 0.0
    %v1277 = vsel %vm1245, %v432, 0.0
    %v1278 = vsel %vm1246, %v433, 0.0
    %v1279 = vsel %vm1247, %v434, 0.0
    %v1280 = vsel %vm1248, %v435, 0.0
    %v1281 = vpack.c.bf16 %v1250, %v1249
    %v1282 = vpack.c.bf16 %v1252, %v1251
    %v1283 = vpack.c.bf16 %v1254, %v1253
    %v1284 = vpack.c.bf16 %v1256, %v1255
    %v1285 = vpack.c.bf16 %v1258, %v1257
    %v1286 = vpack.c.bf16 %v1260, %v1259
    %v1287 = vpack.c.bf16 %v1262, %v1261
    %v1288 = vpack.c.bf16 %v1264, %v1263
    %v1289 = vpack.c.bf16 %v1266, %v1265
    %v1290 = vpack.c.bf16 %v1268, %v1267
    %v1291 = vpack.c.bf16 %v1270, %v1269
    %v1292 = vpack.c.bf16 %v1272, %v1271
    %v1293 = vpack.c.bf16 %v1274, %v1273
    %v1294 = vpack.c.bf16 %v1276, %v1275
    %v1295 = vpack.c.bf16 %v1278, %v1277
    %v1296 = vpack.c.bf16 %v1280, %v1279
    %v1313 = vunpack.c.l.b16 %v1281
    %v1314 = vunpack.c.h.b16 %v1281
    %v1315 = vunpack.c.l.b16 %v1282
    %v1316 = vunpack.c.h.b16 %v1282
    %v1317 = vunpack.c.l.b16 %v1283
    %v1318 = vunpack.c.h.b16 %v1283
    %v1319 = vunpack.c.l.b16 %v1284
    %v1320 = vunpack.c.h.b16 %v1284
    %v1321 = vunpack.c.l.b16 %v1285
    %v1322 = vunpack.c.h.b16 %v1285
    %v1323 = vunpack.c.l.b16 %v1286
    %v1324 = vunpack.c.h.b16 %v1286
    %v1325 = vunpack.c.l.b16 %v1287
    %v1326 = vunpack.c.h.b16 %v1287
    %v1327 = vunpack.c.l.b16 %v1288
    %v1328 = vunpack.c.h.b16 %v1288
    %v1329 = vunpack.c.l.b16 %v1289
    %v1330 = vunpack.c.h.b16 %v1289
    %v1331 = vunpack.c.l.b16 %v1290
    %v1332 = vunpack.c.h.b16 %v1290
    %v1333 = vunpack.c.l.b16 %v1291
    %v1334 = vunpack.c.h.b16 %v1291
    %v1335 = vunpack.c.l.b16 %v1292
    %v1336 = vunpack.c.h.b16 %v1292
    %v1337 = vunpack.c.l.b16 %v1293
    %v1338 = vunpack.c.h.b16 %v1293
    %v1339 = vunpack.c.l.b16 %v1294
    %v1340 = vunpack.c.h.b16 %v1294
    %v1341 = vunpack.c.l.b16 %v1295
    %v1342 = vunpack.c.h.b16 %v1295
    %v1343 = vunpack.c.l.b16 %v1296
    %v1344 = vunpack.c.h.b16 %v1296
    %v1345 = vpack.c.b16 %v1313, %v1313
    %v1346 = vpack.c.b16 %v1314, %v1314
    %v1347 = vpack.c.b16 %v1315, %v1315
    %v1348 = vpack.c.b16 %v1316, %v1316
    %v1349 = vpack.c.b16 %v1317, %v1317
    %v1350 = vpack.c.b16 %v1318, %v1318
    %v1351 = vpack.c.b16 %v1319, %v1319
    %v1352 = vpack.c.b16 %v1320, %v1320
    %v1353 = vpack.c.b16 %v1321, %v1321
    %v1354 = vpack.c.b16 %v1322, %v1322
    %v1355 = vpack.c.b16 %v1323, %v1323
    %v1356 = vpack.c.b16 %v1324, %v1324
    %v1357 = vpack.c.b16 %v1325, %v1325
    %v1358 = vpack.c.b16 %v1326, %v1326
    %v1359 = vpack.c.b16 %v1327, %v1327
    %v1360 = vpack.c.b16 %v1328, %v1328
    %v1361 = vpack.c.b16 %v1329, %v1329
    %v1362 = vpack.c.b16 %v1330, %v1330
    %v1363 = vpack.c.b16 %v1331, %v1331
    %v1364 = vpack.c.b16 %v1332, %v1332
    %v1365 = vpack.c.b16 %v1333, %v1333
    %v1366 = vpack.c.b16 %v1334, %v1334
    %v1367 = vpack.c.b16 %v1335, %v1335
    %v1368 = vpack.c.b16 %v1336, %v1336
    %v1369 = vpack.c.b16 %v1337, %v1337
    %v1370 = vpack.c.b16 %v1338, %v1338
    %v1371 = vpack.c.b16 %v1339, %v1339
    %v1372 = vpack.c.b16 %v1340, %v1340
    %v1373 = vpack.c.b16 %v1341, %v1341
    %v1374 = vpack.c.b16 %v1342, %v1342
    %v1375 = vpack.c.b16 %v1343, %v1343
    %v1376 = vpack.c.b16 %v1344, %v1344
    %1409 = vst [vmem:[#allocation7] sm:$0xf] %v1345
    %1410 = vst [vmem:[#allocation7 + $0x4] sm:$0xf] %v1346
    %1411 = vst [vmem:[#allocation7 + $0x8] sm:$0xf] %v1347
    %1412 = vst [vmem:[#allocation7 + $0xc] sm:$0xf] %v1348
    %1413 = vst [vmem:[#allocation7 + $0x10] sm:$0xf] %v1349
    %1414 = vst [vmem:[#allocation7 + $0x14] sm:$0xf] %v1350
    %1415 = vst [vmem:[#allocation7 + $0x18] sm:$0xf] %v1351
    %1416 = vst [vmem:[#allocation7 + $0x1c] sm:$0xf] %v1352
    %1417 = vst [vmem:[#allocation7 + $0x20] sm:$0xf] %v1353
    %1418 = vst [vmem:[#allocation7 + $0x24] sm:$0xf] %v1354
    %1419 = vst [vmem:[#allocation7 + $0x28] sm:$0xf] %v1355
    %1420 = vst [vmem:[#allocation7 + $0x2c] sm:$0xf] %v1356
    %1421 = vst [vmem:[#allocation7 + $0x30] sm:$0xf] %v1357
    %1422 = vst [vmem:[#allocation7 + $0x34] sm:$0xf] %v1358
    %1423 = vst [vmem:[#allocation7 + $0x38] sm:$0xf] %v1359
    %1424 = vst [vmem:[#allocation7 + $0x3c] sm:$0xf] %v1360
    %1425 = vst [vmem:[#allocation7 + $0x40] sm:$0xf] %v1361
    %1426 = vst [vmem:[#allocation7 + $0x44] sm:$0xf] %v1362
    %1427 = vst [vmem:[#allocation7 + $0x48] sm:$0xf] %v1363
    %1428 = vst [vmem:[#allocation7 + $0x4c] sm:$0xf] %v1364
    %1429 = vst [vmem:[#allocation7 + $0x50] sm:$0xf] %v1365
    %1430 = vst [vmem:[#allocation7 + $0x54] sm:$0xf] %v1366
    %1431 = vst [vmem:[#allocation7 + $0x58] sm:$0xf] %v1367
    %1432 = vst [vmem:[#allocation7 + $0x5c] sm:$0xf] %v1368
    %1433 = vst [vmem:[#allocation7 + $0x60] sm:$0xf] %v1369
    %1434 = vst [vmem:[#allocation7 + $0x64] sm:$0xf] %v1370
    %1435 = vst [vmem:[#allocation7 + $0x68] sm:$0xf] %v1371
    %1436 = vst [vmem:[#allocation7 + $0x6c] sm:$0xf] %v1372
    %1437 = vst [vmem:[#allocation7 + $0x70] sm:$0xf] %v1373
    %1438 = vst [vmem:[#allocation7 + $0x74] sm:$0xf] %v1374
    %1439 = vst [vmem:[#allocation7 + $0x78] sm:$0xf] %v1375
    %1440 = vst [vmem:[#allocation7 + $0x7c] sm:$0xf] %v1376
    // Predicated region
    $region22: #{tpu_custom_call.1} parent=1 // pred_check
      _
    $region23: #{tpu_custom_call.1} parent=1 // pred_check_branch
      %1442 = sbr.rel (0) target = $region25
    $region24: #{tpu_custom_call.1} parent=1 // pred_region
      %s1444 = ssub.s32 2048, 2048
      %1445 = vsyncadd [#allocation4], %s1444
      %s1446 = sshll.u32 [#allocation7], 4
      %s1447 = int_to_ptr.vmem [resolvable:$true] %s1446
      %1452 = dma.vmem_to_hbm [thread:$0]  %s1447, 2048, %s3, [#allocation4], 64, 64, 4
    $region25: #{tpu_custom_call.1} parent=1 // pred_fallthru
      _
    // Predicated region
    $region26: #{tpu_custom_call.1} parent=1 // pred_check
      _
    $region27: #{tpu_custom_call.1} parent=1 // pred_check_branch
      %1454 = sbr.rel (0) target = $region29
    $region28: #{tpu_custom_call.1} parent=1 // pred_region
      %1455 = dma.done [#allocation4], 2048
    $region29: #{tpu_custom_call.1} parent=1 // pred_fallthru
      _
    %1456 = vsyncpa [#allocation3], 1
    %1457 = vsyncpa [#allocation6], 1
    %1458 = vsyncpa [#allocation4], 1

</llo_original>
